<compile_context>
chip_gen: v6e
topology: v6e:2x2x1
jax: 0.10.0
libtpu: 0.0.40
codegen_flags: <defaults>
</compile_context>

<pallas_src>
import functools
import math

import jax
import jax.numpy as jnp
from jax.experimental import pallas as pl
from jax.experimental.pallas import tpu as pltpu


def _silu(t):
    # SiLU(x) = x * sigmoid(x) = x / (1 + exp(-x)); only exp + div (robust lowering).
    return t / (1.0 + jnp.exp(-t))


def _max_pool_same_flat(t, k, w_idx, h_idx, H, W):
    """Stride-1, 'same'-padded (implicit -inf) k x k max pool on a (C, H*W) map.

    Shifted windows are realized with pltpu.roll along the lane axis plus row /
    column validity masks, so no in-kernel pad / reshape / concatenate is needed.
    The pool is separable: a W-direction pass followed by an H-direction pass.
    """
    assert k % 2 == 1
    HW = H * W
    p = k // 2
    neg = -jnp.inf

    # pass 1: max over the W (within-row) direction
    r = t
    for d in range(-p, p + 1):
        if d == 0:
            continue
        s = pltpu.roll(t, shift=(-d) % HW, axis=1)        # s[f] = t[f + d]
        valid = jnp.logical_and(w_idx >= -d, w_idx < W - d)
        r = jnp.maximum(r, jnp.where(valid, s, neg))

    # pass 2: max over the H (across-row) direction
    out = r
    for d in range(-p, p + 1):
        if d == 0:
            continue
        s = pltpu.roll(r, shift=(-d * W) % HW, axis=1)    # s[f] = r[f + d*W]
        valid = jnp.logical_and(h_idx >= -d, h_idx < H - d)
        out = jnp.maximum(out, jnp.where(valid, s, neg))
    return out


def _spp_kernel(x_ref, w1_ref, b1_ref, w2_ref, b2_ref, wi_ref, hi_ref, o_ref,
                *, H, W, ks):
    x = x_ref[0]                      # (c1, HW)
    w_idx = wi_ref[...]               # (c_, HW) int32: W coordinate of each lane
    h_idx = hi_ref[...]               # (c_, HW) int32: H coordinate of each lane

    # cv1: BN-folded 1x1 conv (channel matmul on the MXU) + SiLU
    y = jnp.dot(w1_ref[...], x, preferred_element_type=jnp.float32)
    y = _silu(y + b1_ref[...])

    # Max-pool pyramid, built incrementally:
    # for stride-1 'same' max pools, pool_b(pool_a(t)) == pool_{a+b-1}(t).
    feats = [y]
    cur, prev_k = y, 1
    for k in ks:
        cur = _max_pool_same_flat(cur, k - prev_k + 1, w_idx, h_idx, H, W)
        feats.append(cur)
        prev_k = k

    # cv2: BN-folded 1x1 conv over the channel concat, written as a sum of
    # per-branch matmuls (no in-kernel concatenate), then SiLU.
    z = b2_ref[...].astype(jnp.float32)           # (c2, 1), broadcasts over HW
    for j, f in enumerate(feats):
        z = z + jnp.dot(w2_ref[j], f, preferred_element_type=jnp.float32)
    o_ref[0] = _silu(z).astype(o_ref.dtype)


def spp_forward(x, params, k=(5, 9, 13)):
    """Pallas implementation of SPP.forward (NCHW in, NCHW out), eval-mode BN."""
    w1, b1, w2, b2 = params["w1"], params["b1"], params["w2"], params["b2"]
    N, c1, H, W = x.shape
    c_mid = w1.shape[0]
    c2 = w2.shape[0]
    nb = len(k) + 1
    assert w1.shape == (c_mid, c1)
    assert w2.shape == (c2, nb * c_mid)
    assert all(kk % 2 == 1 for kk in k), "SPP pooling kernels must be odd"
    assert list(k) == sorted(k) and all((b - a) % 2 == 0 for a, b in zip(k, k[1:]))

    HW = H * W
    xf = x.reshape(N, c1, HW)                                  # lane-dense layout
    # Split cv2 weight per pyramid branch: w2s[j] == w2[:, j*c_mid:(j+1)*c_mid]
    w2s = w2.reshape(c2, nb, c_mid).transpose(1, 0, 2)
    b1c = b1.reshape(c_mid, 1).astype(jnp.float32)
    b2c = b2.reshape(c2, 1).astype(jnp.float32)

    # Static H/W coordinates of every flattened-spatial lane (pool boundary masks),
    # built wrapper-side to avoid in-kernel integer div/mod.
    wi = jnp.broadcast_to(jnp.arange(W, dtype=jnp.int32)[None, None, :],
                          (c_mid, H, W)).reshape(c_mid, HW)
    hi = jnp.broadcast_to(jnp.arange(H, dtype=jnp.int32)[None, :, None],
                          (c_mid, H, W)).reshape(c_mid, HW)

    kernel = functools.partial(_spp_kernel, H=H, W=W, ks=tuple(k))

    out = pl.pallas_call(
        kernel,
        out_shape=jax.ShapeDtypeStruct((N, c2, HW), x.dtype),
        grid=(N,),
        in_specs=[
            pl.BlockSpec((1, c1, HW), lambda n: (n, 0, 0)),       # x (flattened)
            pl.BlockSpec((c_mid, c1), lambda n: (0, 0)),          # cv1 weight
            pl.BlockSpec((c_mid, 1), lambda n: (0, 0)),           # cv1 bias
            pl.BlockSpec((nb, c2, c_mid), lambda n: (0, 0, 0)),   # cv2 weight (split)
            pl.BlockSpec((c2, 1), lambda n: (0, 0)),              # cv2 bias
            pl.BlockSpec((c_mid, HW), lambda n: (0, 0)),          # W coords
            pl.BlockSpec((c_mid, HW), lambda n: (0, 0)),          # H coords
        ],
        out_specs=pl.BlockSpec((1, c2, HW), lambda n: (n, 0, 0)),
        compiler_params=pltpu.CompilerParams(
            dimension_semantics=("parallel",)),
    )(xf, w1, b1c, w2s, b2c, wi, hi)
    return out.reshape(N, c2, H, W)


def init_spp_params(key, c1, c2, k=(5, 9, 13), dtype=jnp.float32):
    """Random Conv+BatchNorm parameters with eval-mode BN folded into the 1x1 convs."""
    assert c1 % 2 == 0
    c_mid = c1 // 2
    nb = len(k) + 1
    eps = 1e-5

    def conv_bn(subkey, cin, cout):
        kw, kg, kb, km, kv = jax.random.split(subkey, 5)
        w = jax.random.normal(kw, (cout, cin), dtype) / math.sqrt(cin)
        gamma = jax.random.uniform(kg, (cout,), dtype, 0.5, 1.5)
        beta = jax.random.normal(kb, (cout,), dtype) * 0.1
        mean = jax.random.normal(km, (cout,), dtype) * 0.1
        var = jax.random.uniform(kv, (cout,), dtype, 0.5, 1.5)
        scale = gamma / jnp.sqrt(var + eps)
        return w * scale[:, None], beta - mean * scale

    k1, k2 = jax.random.split(key)
    w1, b1 = conv_bn(k1, c1, c_mid)
    w2, b2 = conv_bn(k2, nb * c_mid, c2)
    return {"w1": w1, "b1": b1, "w2": w2, "b2": b2}


def _spp_reference(x, params, k=(5, 9, 13)):
    """Pure-JAX/XLA reference matching the PyTorch SPP module (eval-mode BN folded)."""
    w1, b1, w2, b2 = params["w1"], params["b1"], params["w2"], params["b2"]

    def conv1x1(t, w, b):
        y = jnp.einsum("oi,nihw->nohw", w, t,
                       precision=jax.lax.Precision.HIGHEST)
        return y + b[None, :, None, None]

    def maxpool_same(t, kk):
        p = kk // 2
        return jax.lax.reduce_window(
            t, -jnp.inf, jax.lax.max,
            window_dimensions=(1, 1, kk, kk),
            window_strides=(1, 1, 1, 1),
            padding=((0, 0), (0, 0), (p, p), (p, p)))

    y = _silu(conv1x1(x, w1, b1))
    cat = jnp.concatenate([y] + [maxpool_same(y, kk) for kk in k], axis=1)
    return _silu(conv1x1(cat, w2, b2))


if __name__ == "__main__":
    key = jax.random.PRNGKey(0)
    kx, kp = jax.random.split(key)

    # Small, TPU-tile-friendly test shapes: c1=16 -> c_=8 hidden, 16x16 spatial (HW=256).
    N, C1, C2, H, W = 2, 16, 16, 16, 16
    x = jax.random.normal(kx, (N, C1, H, W), dtype=jnp.float32)
    params = init_spp_params(kp, C1, C2)

    out = spp_forward(x, params)
    out = jax.block_until_ready(out)

    ref = _spp_reference(x, params)
    assert out.shape == ref.shape, (out.shape, ref.shape)
    err = float(jnp.max(jnp.abs(out - ref)))
    assert err < 1e-4, f"Pallas SPP kernel mismatch vs reference (max abs err {err})"

    print("KERNEL_OK")
</pallas_src>

<mosaic_0001>
module attributes {stable_mosaic.version = 11 : i64} {
  func.func @_spp_kernel(%arg0: i32, %arg1: memref<1x16x256xf32, #tpu.memory_space<vmem>>, %arg2: memref<8x16xf32, #tpu.memory_space<vmem>>, %arg3: memref<8x1xf32, #tpu.memory_space<vmem>>, %arg4: memref<4x16x8xf32, #tpu.memory_space<vmem>>, %arg5: memref<16x1xf32, #tpu.memory_space<vmem>>, %arg6: memref<8x256xi32, #tpu.memory_space<vmem>>, %arg7: memref<8x256xi32, #tpu.memory_space<vmem>>, %arg8: memref<1x16x256xf32, #tpu.memory_space<vmem>>) attributes {dimension_semantics = [#tpu.dimension_semantics<parallel>], iteration_bounds = array<i64: 2>, scalar_prefetch = 0 : i64, scratch_operands = 0 : i64, tpu.core_type = #tpu.core_type<tc>, window_params = [{transform_indices = @transform_0, window_bounds = array<i64: 1, 16, 256>}, {pipeline_mode = #tpu.pipeline_mode<synchronous>, transform_indices = @transform_1, window_bounds = array<i64: 8, 16>}, {pipeline_mode = #tpu.pipeline_mode<synchronous>, transform_indices = @transform_2, window_bounds = array<i64: 8, 1>}, {pipeline_mode = #tpu.pipeline_mode<synchronous>, transform_indices = @transform_3, window_bounds = array<i64: 4, 16, 8>}, {pipeline_mode = #tpu.pipeline_mode<synchronous>, transform_indices = @transform_4, window_bounds = array<i64: 16, 1>}, {pipeline_mode = #tpu.pipeline_mode<synchronous>, transform_indices = @transform_5, window_bounds = array<i64: 8, 256>}, {pipeline_mode = #tpu.pipeline_mode<synchronous>, transform_indices = @transform_6, window_bounds = array<i64: 8, 256>}, {transform_indices = @transform_7, window_bounds = array<i64: 1, 16, 256>}]} {
    %c0 = arith.constant 0 : index
    %c0_0 = arith.constant 0 : index
    %c0_1 = arith.constant 0 : index
    %0 = vector.load %arg1[%c0, %c0_0, %c0_1] : memref<1x16x256xf32, #tpu.memory_space<vmem>>, vector<1x16x256xf32>
    %1 = vector.shape_cast %0 : vector<1x16x256xf32> to vector<16x256xf32>
    %c0_2 = arith.constant 0 : index
    %c0_3 = arith.constant 0 : index
    %2 = vector.load %arg6[%c0_2, %c0_3] : memref<8x256xi32, #tpu.memory_space<vmem>>, vector<8x256xi32>
    %c0_4 = arith.constant 0 : index
    %c0_5 = arith.constant 0 : index
    %3 = vector.load %arg7[%c0_4, %c0_5] : memref<8x256xi32, #tpu.memory_space<vmem>>, vector<8x256xi32>
    %c0_6 = arith.constant 0 : index
    %c0_7 = arith.constant 0 : index
    %4 = vector.load %arg2[%c0_6, %c0_7] : memref<8x16xf32, #tpu.memory_space<vmem>>, vector<8x16xf32>
    %cst = arith.constant dense<0.000000e+00> : vector<8x256xf32>
    %5 = tpu.matmul %4, %1, %cst {dimension_numbers = #tpu.dot_dimension_numbers<[1], [0], [0], [1], [0, 0, 1, 1], [], []>} : vector<8x16xf32>, vector<16x256xf32>, vector<8x256xf32> -> vector<8x256xf32>
    %c0_8 = arith.constant 0 : index
    %c0_9 = arith.constant 0 : index
    %6 = vector.load %arg3[%c0_8, %c0_9] : memref<8x1xf32, #tpu.memory_space<vmem>>, vector<8x1xf32>
    %7 = vector.broadcast %6 : vector<8x1xf32> to vector<8x256xf32>
    %8 = arith.addf %5, %7 : vector<8x256xf32>
    %cst_10 = arith.constant 0.000000e+00 : f32
    %9 = vector.broadcast %cst_10 : f32 to vector<8x256xf32>
    %10 = arith.subf %9, %8 : vector<8x256xf32>
    %11 = math.exp %10 : vector<8x256xf32>
    %cst_11 = arith.constant 1.000000e+00 : f32
    %12 = vector.broadcast %cst_11 : f32 to vector<8x256xf32>
    %13 = arith.addf %12, %11 : vector<8x256xf32>
    %14 = arith.divf %8, %13 : vector<8x256xf32>
    %c2_i32 = arith.constant 2 : i32
    %15 = tpu.dynamic_rotate %14 by %c2_i32 dim 1 : vector<8x256xf32>, i32 -> vector<8x256xf32>
    %c2_i32_12 = arith.constant 2 : i32
    %16 = vector.broadcast %c2_i32_12 : i32 to vector<8x256xi32>
    %17 = arith.cmpi sge, %2, %16 : vector<8x256xi32>
    %c18_i32 = arith.constant 18 : i32
    %18 = vector.broadcast %c18_i32 : i32 to vector<8x256xi32>
    %19 = arith.cmpi slt, %2, %18 : vector<8x256xi32>
    %20 = arith.andi %17, %19 : vector<8x256xi1>
    %cst_13 = arith.constant 0xFF800000 : f32
    %21 = vector.broadcast %cst_13 : f32 to vector<8x256xf32>
    %22 = arith.select %20, %15, %21 : vector<8x256xi1>, vector<8x256xf32>
    %23 = arith.maximumf %14, %22 : vector<8x256xf32>
    %c1_i32 = arith.constant 1 : i32
    %24 = tpu.dynamic_rotate %14 by %c1_i32 dim 1 : vector<8x256xf32>, i32 -> vector<8x256xf32>
    %c1_i32_14 = arith.constant 1 : i32
    %25 = vector.broadcast %c1_i32_14 : i32 to vector<8x256xi32>
    %26 = arith.cmpi sge, %2, %25 : vector<8x256xi32>
    %c17_i32 = arith.constant 17 : i32
    %27 = vector.broadcast %c17_i32 : i32 to vector<8x256xi32>
    %28 = arith.cmpi slt, %2, %27 : vector<8x256xi32>
    %29 = arith.andi %26, %28 : vector<8x256xi1>
    %cst_15 = arith.constant 0xFF800000 : f32
    %30 = vector.broadcast %cst_15 : f32 to vector<8x256xf32>
    %31 = arith.select %29, %24, %30 : vector<8x256xi1>, vector<8x256xf32>
    %32 = arith.maximumf %23, %31 : vector<8x256xf32>
    %c255_i32 = arith.constant 255 : i32
    %33 = tpu.dynamic_rotate %14 by %c255_i32 dim 1 : vector<8x256xf32>, i32 -> vector<8x256xf32>
    %c-1_i32 = arith.constant -1 : i32
    %34 = vector.broadcast %c-1_i32 : i32 to vector<8x256xi32>
    %35 = arith.cmpi sge, %2, %34 : vector<8x256xi32>
    %c15_i32 = arith.constant 15 : i32
    %36 = vector.broadcast %c15_i32 : i32 to vector<8x256xi32>
    %37 = arith.cmpi slt, %2, %36 : vector<8x256xi32>
    %38 = arith.andi %35, %37 : vector<8x256xi1>
    %cst_16 = arith.constant 0xFF800000 : f32
    %39 = vector.broadcast %cst_16 : f32 to vector<8x256xf32>
    %40 = arith.select %38, %33, %39 : vector<8x256xi1>, vector<8x256xf32>
    %41 = arith.maximumf %32, %40 : vector<8x256xf32>
    %c254_i32 = arith.constant 254 : i32
    %42 = tpu.dynamic_rotate %14 by %c254_i32 dim 1 : vector<8x256xf32>, i32 -> vector<8x256xf32>
    %c-2_i32 = arith.constant -2 : i32
    %43 = vector.broadcast %c-2_i32 : i32 to vector<8x256xi32>
    %44 = arith.cmpi sge, %2, %43 : vector<8x256xi32>
    %c14_i32 = arith.constant 14 : i32
    %45 = vector.broadcast %c14_i32 : i32 to vector<8x256xi32>
    %46 = arith.cmpi slt, %2, %45 : vector<8x256xi32>
    %47 = arith.andi %44, %46 : vector<8x256xi1>
    %cst_17 = arith.constant 0xFF800000 : f32
    %48 = vector.broadcast %cst_17 : f32 to vector<8x256xf32>
    %49 = arith.select %47, %42, %48 : vector<8x256xi1>, vector<8x256xf32>
    %50 = arith.maximumf %41, %49 : vector<8x256xf32>
    %c32_i32 = arith.constant 32 : i32
    %51 = tpu.dynamic_rotate %50 by %c32_i32 dim 1 : vector<8x256xf32>, i32 -> vector<8x256xf32>
    %c2_i32_18 = arith.constant 2 : i32
    %52 = vector.broadcast %c2_i32_18 : i32 to vector<8x256xi32>
    %53 = arith.cmpi sge, %3, %52 : vector<8x256xi32>
    %c18_i32_19 = arith.constant 18 : i32
    %54 = vector.broadcast %c18_i32_19 : i32 to vector<8x256xi32>
    %55 = arith.cmpi slt, %3, %54 : vector<8x256xi32>
    %56 = arith.andi %53, %55 : vector<8x256xi1>
    %cst_20 = arith.constant 0xFF800000 : f32
    %57 = vector.broadcast %cst_20 : f32 to vector<8x256xf32>
    %58 = arith.select %56, %51, %57 : vector<8x256xi1>, vector<8x256xf32>
    %59 = arith.maximumf %50, %58 : vector<8x256xf32>
    %c16_i32 = arith.constant 16 : i32
    %60 = tpu.dynamic_rotate %50 by %c16_i32 dim 1 : vector<8x256xf32>, i32 -> vector<8x256xf32>
    %c1_i32_21 = arith.constant 1 : i32
    %61 = vector.broadcast %c1_i32_21 : i32 to vector<8x256xi32>
    %62 = arith.cmpi sge, %3, %61 : vector<8x256xi32>
    %c17_i32_22 = arith.constant 17 : i32
    %63 = vector.broadcast %c17_i32_22 : i32 to vector<8x256xi32>
    %64 = arith.cmpi slt, %3, %63 : vector<8x256xi32>
    %65 = arith.andi %62, %64 : vector<8x256xi1>
    %cst_23 = arith.constant 0xFF800000 : f32
    %66 = vector.broadcast %cst_23 : f32 to vector<8x256xf32>
    %67 = arith.select %65, %60, %66 : vector<8x256xi1>, vector<8x256xf32>
    %68 = arith.maximumf %59, %67 : vector<8x256xf32>
    %c240_i32 = arith.constant 240 : i32
    %69 = tpu.dynamic_rotate %50 by %c240_i32 dim 1 : vector<8x256xf32>, i32 -> vector<8x256xf32>
    %c-1_i32_24 = arith.constant -1 : i32
    %70 = vector.broadcast %c-1_i32_24 : i32 to vector<8x256xi32>
    %71 = arith.cmpi sge, %3, %70 : vector<8x256xi32>
    %c15_i32_25 = arith.constant 15 : i32
    %72 = vector.broadcast %c15_i32_25 : i32 to vector<8x256xi32>
    %73 = arith.cmpi slt, %3, %72 : vector<8x256xi32>
    %74 = arith.andi %71, %73 : vector<8x256xi1>
    %cst_26 = arith.constant 0xFF800000 : f32
    %75 = vector.broadcast %cst_26 : f32 to vector<8x256xf32>
    %76 = arith.select %74, %69, %75 : vector<8x256xi1>, vector<8x256xf32>
    %77 = arith.maximumf %68, %76 : vector<8x256xf32>
    %c224_i32 = arith.constant 224 : i32
    %78 = tpu.dynamic_rotate %50 by %c224_i32 dim 1 : vector<8x256xf32>, i32 -> vector<8x256xf32>
    %c-2_i32_27 = arith.constant -2 : i32
    %79 = vector.broadcast %c-2_i32_27 : i32 to vector<8x256xi32>
    %80 = arith.cmpi sge, %3, %79 : vector<8x256xi32>
    %c14_i32_28 = arith.constant 14 : i32
    %81 = vector.broadcast %c14_i32_28 : i32 to vector<8x256xi32>
    %82 = arith.cmpi slt, %3, %81 : vector<8x256xi32>
    %83 = arith.andi %80, %82 : vector<8x256xi1>
    %cst_29 = arith.constant 0xFF800000 : f32
    %84 = vector.broadcast %cst_29 : f32 to vector<8x256xf32>
    %85 = arith.select %83, %78, %84 : vector<8x256xi1>, vector<8x256xf32>
    %86 = arith.maximumf %77, %85 : vector<8x256xf32>
    %c2_i32_30 = arith.constant 2 : i32
    %87 = tpu.dynamic_rotate %86 by %c2_i32_30 dim 1 : vector<8x256xf32>, i32 -> vector<8x256xf32>
    %c2_i32_31 = arith.constant 2 : i32
    %88 = vector.broadcast %c2_i32_31 : i32 to vector<8x256xi32>
    %89 = arith.cmpi sge, %2, %88 : vector<8x256xi32>
    %c18_i32_32 = arith.constant 18 : i32
    %90 = vector.broadcast %c18_i32_32 : i32 to vector<8x256xi32>
    %91 = arith.cmpi slt, %2, %90 : vector<8x256xi32>
    %92 = arith.andi %89, %91 : vector<8x256xi1>
    %cst_33 = arith.constant 0xFF800000 : f32
    %93 = vector.broadcast %cst_33 : f32 to vector<8x256xf32>
    %94 = arith.select %92, %87, %93 : vector<8x256xi1>, vector<8x256xf32>
    %95 = arith.maximumf %86, %94 : vector<8x256xf32>
    %c1_i32_34 = arith.constant 1 : i32
    %96 = tpu.dynamic_rotate %86 by %c1_i32_34 dim 1 : vector<8x256xf32>, i32 -> vector<8x256xf32>
    %c1_i32_35 = arith.constant 1 : i32
    %97 = vector.broadcast %c1_i32_35 : i32 to vector<8x256xi32>
    %98 = arith.cmpi sge, %2, %97 : vector<8x256xi32>
    %c17_i32_36 = arith.constant 17 : i32
    %99 = vector.broadcast %c17_i32_36 : i32 to vector<8x256xi32>
    %100 = arith.cmpi slt, %2, %99 : vector<8x256xi32>
    %101 = arith.andi %98, %100 : vector<8x256xi1>
    %cst_37 = arith.constant 0xFF800000 : f32
    %102 = vector.broadcast %cst_37 : f32 to vector<8x256xf32>
    %103 = arith.select %101, %96, %102 : vector<8x256xi1>, vector<8x256xf32>
    %104 = arith.maximumf %95, %103 : vector<8x256xf32>
    %c255_i32_38 = arith.constant 255 : i32
    %105 = tpu.dynamic_rotate %86 by %c255_i32_38 dim 1 : vector<8x256xf32>, i32 -> vector<8x256xf32>
    %c-1_i32_39 = arith.constant -1 : i32
    %106 = vector.broadcast %c-1_i32_39 : i32 to vector<8x256xi32>
    %107 = arith.cmpi sge, %2, %106 : vector<8x256xi32>
    %c15_i32_40 = arith.constant 15 : i32
    %108 = vector.broadcast %c15_i32_40 : i32 to vector<8x256xi32>
    %109 = arith.cmpi slt, %2, %108 : vector<8x256xi32>
    %110 = arith.andi %107, %109 : vector<8x256xi1>
    %cst_41 = arith.constant 0xFF800000 : f32
    %111 = vector.broadcast %cst_41 : f32 to vector<8x256xf32>
    %112 = arith.select %110, %105, %111 : vector<8x256xi1>, vector<8x256xf32>
    %113 = arith.maximumf %104, %112 : vector<8x256xf32>
    %c254_i32_42 = arith.constant 254 : i32
    %114 = tpu.dynamic_rotate %86 by %c254_i32_42 dim 1 : vector<8x256xf32>, i32 -> vector<8x256xf32>
    %c-2_i32_43 = arith.constant -2 : i32
    %115 = vector.broadcast %c-2_i32_43 : i32 to vector<8x256xi32>
    %116 = arith.cmpi sge, %2, %115 : vector<8x256xi32>
    %c14_i32_44 = arith.constant 14 : i32
    %117 = vector.broadcast %c14_i32_44 : i32 to vector<8x256xi32>
    %118 = arith.cmpi slt, %2, %117 : vector<8x256xi32>
    %119 = arith.andi %116, %118 : vector<8x256xi1>
    %cst_45 = arith.constant 0xFF800000 : f32
    %120 = vector.broadcast %cst_45 : f32 to vector<8x256xf32>
    %121 = arith.select %119, %114, %120 : vector<8x256xi1>, vector<8x256xf32>
    %122 = arith.maximumf %113, %121 : vector<8x256xf32>
    %c32_i32_46 = arith.constant 32 : i32
    %123 = tpu.dynamic_rotate %122 by %c32_i32_46 dim 1 : vector<8x256xf32>, i32 -> vector<8x256xf32>
    %c2_i32_47 = arith.constant 2 : i32
    %124 = vector.broadcast %c2_i32_47 : i32 to vector<8x256xi32>
    %125 = arith.cmpi sge, %3, %124 : vector<8x256xi32>
    %c18_i32_48 = arith.constant 18 : i32
    %126 = vector.broadcast %c18_i32_48 : i32 to vector<8x256xi32>
    %127 = arith.cmpi slt, %3, %126 : vector<8x256xi32>
    %128 = arith.andi %125, %127 : vector<8x256xi1>
    %cst_49 = arith.constant 0xFF800000 : f32
    %129 = vector.broadcast %cst_49 : f32 to vector<8x256xf32>
    %130 = arith.select %128, %123, %129 : vector<8x256xi1>, vector<8x256xf32>
    %131 = arith.maximumf %122, %130 : vector<8x256xf32>
    %c16_i32_50 = arith.constant 16 : i32
    %132 = tpu.dynamic_rotate %122 by %c16_i32_50 dim 1 : vector<8x256xf32>, i32 -> vector<8x256xf32>
    %c1_i32_51 = arith.constant 1 : i32
    %133 = vector.broadcast %c1_i32_51 : i32 to vector<8x256xi32>
    %134 = arith.cmpi sge, %3, %133 : vector<8x256xi32>
    %c17_i32_52 = arith.constant 17 : i32
    %135 = vector.broadcast %c17_i32_52 : i32 to vector<8x256xi32>
    %136 = arith.cmpi slt, %3, %135 : vector<8x256xi32>
    %137 = arith.andi %134, %136 : vector<8x256xi1>
    %cst_53 = arith.constant 0xFF800000 : f32
    %138 = vector.broadcast %cst_53 : f32 to vector<8x256xf32>
    %139 = arith.select %137, %132, %138 : vector<8x256xi1>, vector<8x256xf32>
    %140 = arith.maximumf %131, %139 : vector<8x256xf32>
    %c240_i32_54 = arith.constant 240 : i32
    %141 = tpu.dynamic_rotate %122 by %c240_i32_54 dim 1 : vector<8x256xf32>, i32 -> vector<8x256xf32>
    %c-1_i32_55 = arith.constant -1 : i32
    %142 = vector.broadcast %c-1_i32_55 : i32 to vector<8x256xi32>
    %143 = arith.cmpi sge, %3, %142 : vector<8x256xi32>
    %c15_i32_56 = arith.constant 15 : i32
    %144 = vector.broadcast %c15_i32_56 : i32 to vector<8x256xi32>
    %145 = arith.cmpi slt, %3, %144 : vector<8x256xi32>
    %146 = arith.andi %143, %145 : vector<8x256xi1>
    %cst_57 = arith.constant 0xFF800000 : f32
    %147 = vector.broadcast %cst_57 : f32 to vector<8x256xf32>
    %148 = arith.select %146, %141, %147 : vector<8x256xi1>, vector<8x256xf32>
    %149 = arith.maximumf %140, %148 : vector<8x256xf32>
    %c224_i32_58 = arith.constant 224 : i32
    %150 = tpu.dynamic_rotate %122 by %c224_i32_58 dim 1 : vector<8x256xf32>, i32 -> vector<8x256xf32>
    %c-2_i32_59 = arith.constant -2 : i32
    %151 = vector.broadcast %c-2_i32_59 : i32 to vector<8x256xi32>
    %152 = arith.cmpi sge, %3, %151 : vector<8x256xi32>
    %c14_i32_60 = arith.constant 14 : i32
    %153 = vector.broadcast %c14_i32_60 : i32 to vector<8x256xi32>
    %154 = arith.cmpi slt, %3, %153 : vector<8x256xi32>
    %155 = arith.andi %152, %154 : vector<8x256xi1>
    %cst_61 = arith.constant 0xFF800000 : f32
    %156 = vector.broadcast %cst_61 : f32 to vector<8x256xf32>
    %157 = arith.select %155, %150, %156 : vector<8x256xi1>, vector<8x256xf32>
    %158 = arith.maximumf %149, %157 : vector<8x256xf32>
    %c2_i32_62 = arith.constant 2 : i32
    %159 = tpu.dynamic_rotate %158 by %c2_i32_62 dim 1 : vector<8x256xf32>, i32 -> vector<8x256xf32>
    %c2_i32_63 = arith.constant 2 : i32
    %160 = vector.broadcast %c2_i32_63 : i32 to vector<8x256xi32>
    %161 = arith.cmpi sge, %2, %160 : vector<8x256xi32>
    %c18_i32_64 = arith.constant 18 : i32
    %162 = vector.broadcast %c18_i32_64 : i32 to vector<8x256xi32>
    %163 = arith.cmpi slt, %2, %162 : vector<8x256xi32>
    %164 = arith.andi %161, %163 : vector<8x256xi1>
    %cst_65 = arith.constant 0xFF800000 : f32
    %165 = vector.broadcast %cst_65 : f32 to vector<8x256xf32>
    %166 = arith.select %164, %159, %165 : vector<8x256xi1>, vector<8x256xf32>
    %167 = arith.maximumf %158, %166 : vector<8x256xf32>
    %c1_i32_66 = arith.constant 1 : i32
    %168 = tpu.dynamic_rotate %158 by %c1_i32_66 dim 1 : vector<8x256xf32>, i32 -> vector<8x256xf32>
    %c1_i32_67 = arith.constant 1 : i32
    %169 = vector.broadcast %c1_i32_67 : i32 to vector<8x256xi32>
    %170 = arith.cmpi sge, %2, %169 : vector<8x256xi32>
    %c17_i32_68 = arith.constant 17 : i32
    %171 = vector.broadcast %c17_i32_68 : i32 to vector<8x256xi32>
    %172 = arith.cmpi slt, %2, %171 : vector<8x256xi32>
    %173 = arith.andi %170, %172 : vector<8x256xi1>
    %cst_69 = arith.constant 0xFF800000 : f32
    %174 = vector.broadcast %cst_69 : f32 to vector<8x256xf32>
    %175 = arith.select %173, %168, %174 : vector<8x256xi1>, vector<8x256xf32>
    %176 = arith.maximumf %167, %175 : vector<8x256xf32>
    %c255_i32_70 = arith.constant 255 : i32
    %177 = tpu.dynamic_rotate %158 by %c255_i32_70 dim 1 : vector<8x256xf32>, i32 -> vector<8x256xf32>
    %c-1_i32_71 = arith.constant -1 : i32
    %178 = vector.broadcast %c-1_i32_71 : i32 to vector<8x256xi32>
    %179 = arith.cmpi sge, %2, %178 : vector<8x256xi32>
    %c15_i32_72 = arith.constant 15 : i32
    %180 = vector.broadcast %c15_i32_72 : i32 to vector<8x256xi32>
    %181 = arith.cmpi slt, %2, %180 : vector<8x256xi32>
    %182 = arith.andi %179, %181 : vector<8x256xi1>
    %cst_73 = arith.constant 0xFF800000 : f32
    %183 = vector.broadcast %cst_73 : f32 to vector<8x256xf32>
    %184 = arith.select %182, %177, %183 : vector<8x256xi1>, vector<8x256xf32>
    %185 = arith.maximumf %176, %184 : vector<8x256xf32>
    %c254_i32_74 = arith.constant 254 : i32
    %186 = tpu.dynamic_rotate %158 by %c254_i32_74 dim 1 : vector<8x256xf32>, i32 -> vector<8x256xf32>
    %c-2_i32_75 = arith.constant -2 : i32
    %187 = vector.broadcast %c-2_i32_75 : i32 to vector<8x256xi32>
    %188 = arith.cmpi sge, %2, %187 : vector<8x256xi32>
    %c14_i32_76 = arith.constant 14 : i32
    %189 = vector.broadcast %c14_i32_76 : i32 to vector<8x256xi32>
    %190 = arith.cmpi slt, %2, %189 : vector<8x256xi32>
    %191 = arith.andi %188, %190 : vector<8x256xi1>
    %cst_77 = arith.constant 0xFF800000 : f32
    %192 = vector.broadcast %cst_77 : f32 to vector<8x256xf32>
    %193 = arith.select %191, %186, %192 : vector<8x256xi1>, vector<8x256xf32>
    %194 = arith.maximumf %185, %193 : vector<8x256xf32>
    %c32_i32_78 = arith.constant 32 : i32
    %195 = tpu.dynamic_rotate %194 by %c32_i32_78 dim 1 : vector<8x256xf32>, i32 -> vector<8x256xf32>
    %c2_i32_79 = arith.constant 2 : i32
    %196 = vector.broadcast %c2_i32_79 : i32 to vector<8x256xi32>
    %197 = arith.cmpi sge, %3, %196 : vector<8x256xi32>
    %c18_i32_80 = arith.constant 18 : i32
    %198 = vector.broadcast %c18_i32_80 : i32 to vector<8x256xi32>
    %199 = arith.cmpi slt, %3, %198 : vector<8x256xi32>
    %200 = arith.andi %197, %199 : vector<8x256xi1>
    %cst_81 = arith.constant 0xFF800000 : f32
    %201 = vector.broadcast %cst_81 : f32 to vector<8x256xf32>
    %202 = arith.select %200, %195, %201 : vector<8x256xi1>, vector<8x256xf32>
    %203 = arith.maximumf %194, %202 : vector<8x256xf32>
    %c16_i32_82 = arith.constant 16 : i32
    %204 = tpu.dynamic_rotate %194 by %c16_i32_82 dim 1 : vector<8x256xf32>, i32 -> vector<8x256xf32>
    %c1_i32_83 = arith.constant 1 : i32
    %205 = vector.broadcast %c1_i32_83 : i32 to vector<8x256xi32>
    %206 = arith.cmpi sge, %3, %205 : vector<8x256xi32>
    %c17_i32_84 = arith.constant 17 : i32
    %207 = vector.broadcast %c17_i32_84 : i32 to vector<8x256xi32>
    %208 = arith.cmpi slt, %3, %207 : vector<8x256xi32>
    %209 = arith.andi %206, %208 : vector<8x256xi1>
    %cst_85 = arith.constant 0xFF800000 : f32
    %210 = vector.broadcast %cst_85 : f32 to vector<8x256xf32>
    %211 = arith.select %209, %204, %210 : vector<8x256xi1>, vector<8x256xf32>
    %212 = arith.maximumf %203, %211 : vector<8x256xf32>
    %c240_i32_86 = arith.constant 240 : i32
    %213 = tpu.dynamic_rotate %194 by %c240_i32_86 dim 1 : vector<8x256xf32>, i32 -> vector<8x256xf32>
    %c-1_i32_87 = arith.constant -1 : i32
    %214 = vector.broadcast %c-1_i32_87 : i32 to vector<8x256xi32>
    %215 = arith.cmpi sge, %3, %214 : vector<8x256xi32>
    %c15_i32_88 = arith.constant 15 : i32
    %216 = vector.broadcast %c15_i32_88 : i32 to vector<8x256xi32>
    %217 = arith.cmpi slt, %3, %216 : vector<8x256xi32>
    %218 = arith.andi %215, %217 : vector<8x256xi1>
    %cst_89 = arith.constant 0xFF800000 : f32
    %219 = vector.broadcast %cst_89 : f32 to vector<8x256xf32>
    %220 = arith.select %218, %213, %219 : vector<8x256xi1>, vector<8x256xf32>
    %221 = arith.maximumf %212, %220 : vector<8x256xf32>
    %c224_i32_90 = arith.constant 224 : i32
    %222 = tpu.dynamic_rotate %194 by %c224_i32_90 dim 1 : vector<8x256xf32>, i32 -> vector<8x256xf32>
    %c-2_i32_91 = arith.constant -2 : i32
    %223 = vector.broadcast %c-2_i32_91 : i32 to vector<8x256xi32>
    %224 = arith.cmpi sge, %3, %223 : vector<8x256xi32>
    %c14_i32_92 = arith.constant 14 : i32
    %225 = vector.broadcast %c14_i32_92 : i32 to vector<8x256xi32>
    %226 = arith.cmpi slt, %3, %225 : vector<8x256xi32>
    %227 = arith.andi %224, %226 : vector<8x256xi1>
    %cst_93 = arith.constant 0xFF800000 : f32
    %228 = vector.broadcast %cst_93 : f32 to vector<8x256xf32>
    %229 = arith.select %227, %222, %228 : vector<8x256xi1>, vector<8x256xf32>
    %230 = arith.maximumf %221, %229 : vector<8x256xf32>
    %c0_94 = arith.constant 0 : index
    %c0_95 = arith.constant 0 : index
    %231 = vector.load %arg5[%c0_94, %c0_95] : memref<16x1xf32, #tpu.memory_space<vmem>>, vector<16x1xf32>
    %c0_96 = arith.constant 0 : index
    %c0_97 = arith.constant 0 : index
    %c0_98 = arith.constant 0 : index
    %232 = vector.load %arg4[%c0_96, %c0_97, %c0_98] : memref<4x16x8xf32, #tpu.memory_space<vmem>>, vector<1x16x8xf32>
    %233 = vector.shape_cast %232 : vector<1x16x8xf32> to vector<16x8xf32>
    %cst_99 = arith.constant dense<0.000000e+00> : vector<16x256xf32>
    %234 = tpu.matmul %233, %14, %cst_99 {dimension_numbers = #tpu.dot_dimension_numbers<[1], [0], [0], [1], [0, 0, 1, 1], [], []>} : vector<16x8xf32>, vector<8x256xf32>, vector<16x256xf32> -> vector<16x256xf32>
    %235 = vector.broadcast %231 : vector<16x1xf32> to vector<16x256xf32>
    %236 = arith.addf %235, %234 : vector<16x256xf32>
    %c1 = arith.constant 1 : index
    %c0_100 = arith.constant 0 : index
    %c0_101 = arith.constant 0 : index
    %237 = vector.load %arg4[%c1, %c0_100, %c0_101] : memref<4x16x8xf32, #tpu.memory_space<vmem>>, vector<1x16x8xf32>
    %238 = vector.shape_cast %237 : vector<1x16x8xf32> to vector<16x8xf32>
    %cst_102 = arith.constant dense<0.000000e+00> : vector<16x256xf32>
    %239 = tpu.matmul %238, %86, %cst_102 {dimension_numbers = #tpu.dot_dimension_numbers<[1], [0], [0], [1], [0, 0, 1, 1], [], []>} : vector<16x8xf32>, vector<8x256xf32>, vector<16x256xf32> -> vector<16x256xf32>
    %240 = arith.addf %236, %239 : vector<16x256xf32>
    %c2 = arith.constant 2 : index
    %c0_103 = arith.constant 0 : index
    %c0_104 = arith.constant 0 : index
    %241 = vector.load %arg4[%c2, %c0_103, %c0_104] : memref<4x16x8xf32, #tpu.memory_space<vmem>>, vector<1x16x8xf32>
    %242 = vector.shape_cast %241 : vector<1x16x8xf32> to vector<16x8xf32>
    %cst_105 = arith.constant dense<0.000000e+00> : vector<16x256xf32>
    %243 = tpu.matmul %242, %158, %cst_105 {dimension_numbers = #tpu.dot_dimension_numbers<[1], [0], [0], [1], [0, 0, 1, 1], [], []>} : vector<16x8xf32>, vector<8x256xf32>, vector<16x256xf32> -> vector<16x256xf32>
    %244 = arith.addf %240, %243 : vector<16x256xf32>
    %c3 = arith.constant 3 : index
    %c0_106 = arith.constant 0 : index
    %c0_107 = arith.constant 0 : index
    %245 = vector.load %arg4[%c3, %c0_106, %c0_107] : memref<4x16x8xf32, #tpu.memory_space<vmem>>, vector<1x16x8xf32>
    %246 = vector.shape_cast %245 : vector<1x16x8xf32> to vector<16x8xf32>
    %cst_108 = arith.constant dense<0.000000e+00> : vector<16x256xf32>
    %247 = tpu.matmul %246, %230, %cst_108 {dimension_numbers = #tpu.dot_dimension_numbers<[1], [0], [0], [1], [0, 0, 1, 1], [], []>} : vector<16x8xf32>, vector<8x256xf32>, vector<16x256xf32> -> vector<16x256xf32>
    %248 = arith.addf %244, %247 : vector<16x256xf32>
    %cst_109 = arith.constant 0.000000e+00 : f32
    %249 = vector.broadcast %cst_109 : f32 to vector<16x256xf32>
    %250 = arith.subf %249, %248 : vector<16x256xf32>
    %251 = math.exp %250 : vector<16x256xf32>
    %cst_110 = arith.constant 1.000000e+00 : f32
    %252 = vector.broadcast %cst_110 : f32 to vector<16x256xf32>
    %253 = arith.addf %252, %251 : vector<16x256xf32>
    %254 = arith.divf %248, %253 : vector<16x256xf32>
    %c0_111 = arith.constant 0 : index
    %c0_112 = arith.constant 0 : index
    %c0_113 = arith.constant 0 : index
    %255 = vector.load %arg8[%c0_111, %c0_112, %c0_113] : memref<1x16x256xf32, #tpu.memory_space<vmem>>, vector<1x16x256xf32>
    %256 = vector.shape_cast %255 : vector<1x16x256xf32> to vector<16x256xf32>
    %257 = vector.shape_cast %254 : vector<16x256xf32> to vector<1x16x256xf32>
    tpu.vector_store %arg8[%c0_111, %c0_112, %c0_113], %257 {strides = array<i32>} : memref<1x16x256xf32, #tpu.memory_space<vmem>>, vector<1x16x256xf32>,
    return
  }
  func.func @transform_0(%arg0: i32) -> (i32, i32, i32) {
    %c0_i32 = arith.constant 0 : i32
    %c0_i32_0 = arith.constant 0 : i32
    %c0_i32_1 = arith.constant 0 : i32
    return %arg0, %c0_i32, %c0_i32_0 : i32, i32, i32
  }
  func.func @transform_1(%arg0: i32) -> (i32, i32) {
    %c0_i32 = arith.constant 0 : i32
    %c0_i32_0 = arith.constant 0 : i32
    %c0_i32_1 = arith.constant 0 : i32
    return %c0_i32, %c0_i32_0 : i32, i32
  }
  func.func @transform_2(%arg0: i32) -> (i32, i32) {
    %c0_i32 = arith.constant 0 : i32
    %c0_i32_0 = arith.constant 0 : i32
    %c0_i32_1 = arith.constant 0 : i32
    return %c0_i32, %c0_i32_0 : i32, i32
  }
  func.func @transform_3(%arg0: i32) -> (i32, i32, i32) {
    %c0_i32 = arith.constant 0 : i32
    %c0_i32_0 = arith.constant 0 : i32
    %c0_i32_1 = arith.constant 0 : i32
    %c0_i32_2 = arith.constant 0 : i32
    return %c0_i32, %c0_i32_0, %c0_i32_1 : i32, i32, i32
  }
  func.func @transform_4(%arg0: i32) -> (i32, i32) {
    %c0_i32 = arith.constant 0 : i32
    %c0_i32_0 = arith.constant 0 : i32
    %c0_i32_1 = arith.constant 0 : i32
    return %c0_i32, %c0_i32_0 : i32, i32
  }
  func.func @transform_5(%arg0: i32) -> (i32, i32) {
    %c0_i32 = arith.constant 0 : i32
    %c0_i32_0 = arith.constant 0 : i32
    %c0_i32_1 = arith.constant 0 : i32
    return %c0_i32, %c0_i32_0 : i32, i32
  }
  func.func @transform_6(%arg0: i32) -> (i32, i32) {
    %c0_i32 = arith.constant 0 : i32
    %c0_i32_0 = arith.constant 0 : i32
    %c0_i32_1 = arith.constant 0 : i32
    return %c0_i32, %c0_i32_0 : i32, i32
  }
  func.func @transform_7(%arg0: i32) -> (i32, i32, i32) {
    %c0_i32 = arith.constant 0 : i32
    %c0_i32_0 = arith.constant 0 : i32
    %c0_i32_1 = arith.constant 0 : i32
    return %arg0, %c0_i32, %c0_i32_0 : i32, i32, i32
  }
}

</mosaic_0001>

<llo_original>
// kernel: tpu_custom_call.1
$region0: #{tpu_custom_call.1}
  #allocation0 [shape = 'u32[]', space=smem, size = 0x4, offset = 0x4, fixed_abs, tag = 'smem constant byte address 0x4 - core index']
  #allocation1 [shape = 'u32[144,128]{1,0:T(1,128)}', space=vmem, size = 0x12000, scoped, tag = 'internal scratch']
  %s0 = inlined_call_operand.vmem [shape: f32[2,16,256], index: 0, kind: input, shape index: {}]
  %s1 = inlined_call_operand.vmem [shape: f32[8,16], index: 1, kind: input, shape index: {}]
  %s2 = inlined_call_operand.vmem [shape: f32[8,1], index: 2, kind: input, shape index: {}]
  %s3 = inlined_call_operand.vmem [shape: f32[4,16,8], index: 3, kind: input, shape index: {}]
  %s4 = inlined_call_operand.vmem [shape: f32[16,1], index: 4, kind: input, shape index: {}]
  %s5 = inlined_call_operand.vmem [shape: s32[8,256], index: 5, kind: input, shape index: {}]
  %s6 = inlined_call_operand.vmem [shape: s32[8,256], index: 6, kind: input, shape index: {}]
  %s7 = inlined_call_operand.hbm [shape: f32[2,16,256], index: 7, kind: output, shape index: {}]
  %s8 = sld [smem:[#allocation0]]
  $region61: #{tpu_custom_call.1} parent=0
    _
  %s10 = ssub.s32 1, %s8
  %s11 = scalar_select 0, %s10, %s8
  $region1: #{tpu_custom_call.1} parent=0
    #allocation2 [shape = 'u8[32768]{0}', space=vmem, size = 0x8000, scoped, tag = 'output window, operand 0']
    #allocation3 [shape = 's32[2]{0}', space=sflag, size = 0x8, scoped, tag = 'scoped memory for tpu_custom_call.1']
    %12 = vsyncpa [#allocation3], 0
    %s13 = scalar_lea.sflag [#allocation3], 1
    %14 = vsyncpa %s13, 0
    loop: start=0, step=1, limit=4
    $region2: #{tpu_custom_call.1} parent=1 // loop_pre_header
      _
    $region3: #{tpu_custom_call.1} parent=1 // loop_header
      %s16 = sphi 0, %s20
      %p17 = scmp.ge.s32.totalorder %s16, 4
      %s26 = sphi 0, %s28
      %s29 = sphi 0, %s26
      %s30 = sphi 0, %s29
      %s46 = sphi 0, %s30
      %s50 = sphi 0, %s50
      %s52 = sphi 0, %s50
      %s53 = sphi 0, %s52
      %s67 = sphi 0, %s53
      %s71 = sphi 0, %s71
      %s73 = sphi 0, %s71
      %s74 = sphi 0, %s73
      %s88 = sphi 0, %s74
      %s92 = sphi 0, %s92
      %s94 = sphi 0, %s92
      %s95 = sphi 0, %s94
      %s109 = sphi 0, %s95
      %s113 = sphi 0, %s113
      %s115 = sphi 0, %s113
      %s116 = sphi 0, %s115
      %s130 = sphi 0, %s116
      %s134 = sphi 0, %s134
      %s136 = sphi 0, %s134
      %s137 = sphi 0, %s136
      %s151 = sphi 0, %s137
      %s155 = sphi 0, %s155
      %s157 = sphi 0, %s155
      %s158 = sphi 0, %s157
      %s172 = sphi 0, %s158
      %s178 = sphi 0, %s180
      %s181 = sphi 0, %s178
      %s182 = sphi 0, %s181
      %s198 = sphi 0, %s182
    $region4: #{tpu_custom_call.1} parent=1 // loop_header_branch
      %19 = sbr.rel (%p17) target = $region8
    $region5: #{tpu_custom_call.1} parent=1 // loop_body
      %s21 = ssub.s32 %s16, 1
      %s22 = ssub.s32 %s16, 2
      %s23 = sadd.s32 %s16, 1
      %s24 = ssub.s32 %s16, %s23
      %p25 = scmp.eq.s32.totalorder %s24, 0
      %s27 = sadd.s32 %s26, 1
      %s28 = scalar_select %p25, %s26, %s27
      %p31 = pneg %p25
      %p32 = scmp.eq.s32.totalorder %s16, 1
      %p33 = por %p31, %p32
      %p34 = scmp.ne.s32.totalorder %s26, %s29
      %p35 = scmp.eq.s32.totalorder %s16, 0
      %p36 = por %p34, %p35
      %p37 = scmp.ne.s32.totalorder %s26, %s29
      %p38 = scmp.eq.s32.totalorder %s21, 1
      %p39 = por %p37, %p38
      %p40 = scmp.ne.s32.totalorder %s29, %s30
      %p41 = scmp.eq.s32.totalorder %s21, 0
      %p42 = por %p40, %p41
      %p43 = scmp.ne.s32.totalorder %s29, %s30
      %p44 = scmp.eq.s32.totalorder %s22, 1
      %p45 = por %p43, %p44
      %p47 = scmp.ne.s32.totalorder %s30, %s46
      %p48 = scmp.eq.s32.totalorder %s22, 0
      %p49 = por %p47, %p48
      %s51 = sadd.s32 %s50, 1
      %p54 = scmp.eq.s32.totalorder %s16, 1
      %p55 = scmp.ne.s32.totalorder %s50, %s52
      %p56 = scmp.eq.s32.totalorder %s16, 0
      %p57 = por %p55, %p56
      %p58 = scmp.ne.s32.totalorder %s50, %s52
      %p59 = scmp.eq.s32.totalorder %s21, 1
      %p60 = por %p58, %p59
      %p61 = scmp.ne.s32.totalorder %s52, %s53
      %p62 = scmp.eq.s32.totalorder %s21, 0
      %p63 = por %p61, %p62
      %p64 = scmp.ne.s32.totalorder %s52, %s53
      %p65 = scmp.eq.s32.totalorder %s22, 1
      %p66 = por %p64, %p65
      %p68 = scmp.ne.s32.totalorder %s53, %s67
      %p69 = scmp.eq.s32.totalorder %s22, 0
      %p70 = por %p68, %p69
      %s72 = sadd.s32 %s71, 1
      %p75 = scmp.eq.s32.totalorder %s16, 1
      %p76 = scmp.ne.s32.totalorder %s71, %s73
      %p77 = scmp.eq.s32.totalorder %s16, 0
      %p78 = por %p76, %p77
      %p79 = scmp.ne.s32.totalorder %s71, %s73
      %p80 = scmp.eq.s32.totalorder %s21, 1
      %p81 = por %p79, %p80
      %p82 = scmp.ne.s32.totalorder %s73, %s74
      %p83 = scmp.eq.s32.totalorder %s21, 0
      %p84 = por %p82, %p83
      %p85 = scmp.ne.s32.totalorder %s73, %s74
      %p86 = scmp.eq.s32.totalorder %s22, 1
      %p87 = por %p85, %p86
      %p89 = scmp.ne.s32.totalorder %s74, %s88
      %p90 = scmp.eq.s32.totalorder %s22, 0
      %p91 = por %p89, %p90
      %s93 = sadd.s32 %s92, 1
      %p96 = scmp.eq.s32.totalorder %s16, 1
      %p97 = scmp.ne.s32.totalorder %s92, %s94
      %p98 = scmp.eq.s32.totalorder %s16, 0
      %p99 = por %p97, %p98
      %p100 = scmp.ne.s32.totalorder %s92, %s94
      %p101 = scmp.eq.s32.totalorder %s21, 1
      %p102 = por %p100, %p101
      %p103 = scmp.ne.s32.totalorder %s94, %s95
      %p104 = scmp.eq.s32.totalorder %s21, 0
      %p105 = por %p103, %p104
      %p106 = scmp.ne.s32.totalorder %s94, %s95
      %p107 = scmp.eq.s32.totalorder %s22, 1
      %p108 = por %p106, %p107
      %p110 = scmp.ne.s32.totalorder %s95, %s109
      %p111 = scmp.eq.s32.totalorder %s22, 0
      %p112 = por %p110, %p111
      %s114 = sadd.s32 %s113, 1
      %p117 = scmp.eq.s32.totalorder %s16, 1
      %p118 = scmp.ne.s32.totalorder %s113, %s115
      %p119 = scmp.eq.s32.totalorder %s16, 0
      %p120 = por %p118, %p119
      %p121 = scmp.ne.s32.totalorder %s113, %s115
      %p122 = scmp.eq.s32.totalorder %s21, 1
      %p123 = por %p121, %p122
      %p124 = scmp.ne.s32.totalorder %s115, %s116
      %p125 = scmp.eq.s32.totalorder %s21, 0
      %p126 = por %p124, %p125
      %p127 = scmp.ne.s32.totalorder %s115, %s116
      %p128 = scmp.eq.s32.totalorder %s22, 1
      %p129 = por %p127, %p128
      %p131 = scmp.ne.s32.totalorder %s116, %s130
      %p132 = scmp.eq.s32.totalorder %s22, 0
      %p133 = por %p131, %p132
      %s135 = sadd.s32 %s134, 1
      %p138 = scmp.eq.s32.totalorder %s16, 1
      %p139 = scmp.ne.s32.totalorder %s134, %s136
      %p140 = scmp.eq.s32.totalorder %s16, 0
      %p141 = por %p139, %p140
      %p142 = scmp.ne.s32.totalorder %s134, %s136
      %p143 = scmp.eq.s32.totalorder %s21, 1
      %p144 = por %p142, %p143
      %p145 = scmp.ne.s32.totalorder %s136, %s137
      %p146 = scmp.eq.s32.totalorder %s21, 0
      %p147 = por %p145, %p146
      %p148 = scmp.ne.s32.totalorder %s136, %s137
      %p149 = scmp.eq.s32.totalorder %s22, 1
      %p150 = por %p148, %p149
      %p152 = scmp.ne.s32.totalorder %s137, %s151
      %p153 = scmp.eq.s32.totalorder %s22, 0
      %p154 = por %p152, %p153
      %s156 = sadd.s32 %s155, 1
      %p159 = scmp.eq.s32.totalorder %s16, 1
      %p160 = scmp.ne.s32.totalorder %s155, %s157
      %p161 = scmp.eq.s32.totalorder %s16, 0
      %p162 = por %p160, %p161
      %p163 = scmp.ne.s32.totalorder %s155, %s157
      %p164 = scmp.eq.s32.totalorder %s21, 1
      %p165 = por %p163, %p164
      %p166 = scmp.ne.s32.totalorder %s157, %s158
      %p167 = scmp.eq.s32.totalorder %s21, 0
      %p168 = por %p166, %p167
      %p169 = scmp.ne.s32.totalorder %s157, %s158
      %p170 = scmp.eq.s32.totalorder %s22, 1
      %p171 = por %p169, %p170
      %p173 = scmp.ne.s32.totalorder %s158, %s172
      %p174 = scmp.eq.s32.totalorder %s22, 0
      %p175 = por %p173, %p174
      %s176 = ssub.s32 %s16, %s23
      %p177 = scmp.eq.s32.totalorder %s176, 0
      %s179 = sadd.s32 %s178, 1
      %s180 = scalar_select %p177, %s178, %s179
      %p183 = pneg %p177
      %p184 = scmp.eq.s32.totalorder %s16, 1
      %p185 = por %p183, %p184
      %p186 = scmp.ne.s32.totalorder %s178, %s181
      %p187 = scmp.eq.s32.totalorder %s16, 0
      %p188 = por %p186, %p187
      %p189 = scmp.ne.s32.totalorder %s178, %s181
      %p190 = scmp.eq.s32.totalorder %s21, 1
      %p191 = por %p189, %p190
      %p192 = scmp.ne.s32.totalorder %s181, %s182
      %p193 = scmp.eq.s32.totalorder %s21, 0
      %p194 = por %p192, %p193
      %p195 = scmp.ne.s32.totalorder %s181, %s182
      %p196 = scmp.eq.s32.totalorder %s22, 1
      %p197 = por %p195, %p196
      %p199 = scmp.ne.s32.totalorder %s182, %s198
      %p200 = scmp.eq.s32.totalorder %s22, 0
      %p201 = por %p199, %p200
      %p202 = scmp.le.s32.totalorder 1, %s16
      %p203 = scmp.lt.s32.totalorder %s16, 3
      %p204 = pnand %p202, %p203
      %p205 = pneg %p204
      // Predicated region
      $region9: #{tpu_custom_call.1} parent=5 // pred_check
        _
      $region10: #{tpu_custom_call.1} parent=5 // pred_check_branch
        %207 = sbr.rel (%p204) target = $region12
      $region11: #{tpu_custom_call.1} parent=5 // pred_region
        %s208 = ssub.s32 %s16, 1
        // Predicated region
        $region13: #{tpu_custom_call.1} parent=11 // pred_check
          %p209 = pneg %p63
        $region14: #{tpu_custom_call.1} parent=11 // pred_check_branch
          %211 = sbr.rel (%p209) target = $region16
        $region15: #{tpu_custom_call.1} parent=11 // pred_region
          _
        $region16: #{tpu_custom_call.1} parent=11 // pred_fallthru
          _
        // Predicated region
        $region17: #{tpu_custom_call.1} parent=11 // pred_check
          %p212 = pneg %p84
        $region18: #{tpu_custom_call.1} parent=11 // pred_check_branch
          %214 = sbr.rel (%p212) target = $region20
        $region19: #{tpu_custom_call.1} parent=11 // pred_region
          _
        $region20: #{tpu_custom_call.1} parent=11 // pred_fallthru
          _
        // Predicated region
        $region21: #{tpu_custom_call.1} parent=11 // pred_check
          %p215 = pneg %p105
        $region22: #{tpu_custom_call.1} parent=11 // pred_check_branch
          %217 = sbr.rel (%p215) target = $region24
        $region23: #{tpu_custom_call.1} parent=11 // pred_region
          _
        $region24: #{tpu_custom_call.1} parent=11 // pred_fallthru
          _
        // Predicated region
        $region25: #{tpu_custom_call.1} parent=11 // pred_check
          %p218 = pneg %p126
        $region26: #{tpu_custom_call.1} parent=11 // pred_check_branch
          %220 = sbr.rel (%p218) target = $region28
        $region27: #{tpu_custom_call.1} parent=11 // pred_region
          _
        $region28: #{tpu_custom_call.1} parent=11 // pred_fallthru
          _
        // Predicated region
        $region29: #{tpu_custom_call.1} parent=11 // pred_check
          %p221 = pneg %p147
        $region30: #{tpu_custom_call.1} parent=11 // pred_check_branch
          %223 = sbr.rel (%p221) target = $region32
        $region31: #{tpu_custom_call.1} parent=11 // pred_region
          _
        $region32: #{tpu_custom_call.1} parent=11 // pred_fallthru
          _
        // Predicated region
        $region33: #{tpu_custom_call.1} parent=11 // pred_check
          %p224 = pneg %p168
        $region34: #{tpu_custom_call.1} parent=11 // pred_check_branch
          %226 = sbr.rel (%p224) target = $region36
        $region35: #{tpu_custom_call.1} parent=11 // pred_region
          _
        $region36: #{tpu_custom_call.1} parent=11 // pred_fallthru
          _
      $region12: #{tpu_custom_call.1} parent=5 // pred_fallthru
        _
      %p227 = scmp.lt.s32.totalorder %s16, 2
      // Predicated region
      $region37: #{tpu_custom_call.1} parent=5 // pred_check
        %p228 = pneg %p227
      $region38: #{tpu_custom_call.1} parent=5 // pred_check_branch
        %230 = sbr.rel (%p228) target = $region40
      $region39: #{tpu_custom_call.1} parent=5 // pred_region
        // Predicated region
        $region41: #{tpu_custom_call.1} parent=39 // pred_check
          %p231 = pneg %p36
        $region42: #{tpu_custom_call.1} parent=39 // pred_check_branch
          %233 = sbr.rel (%p231) target = $region44
        $region43: #{tpu_custom_call.1} parent=39 // pred_region
          %p234 = scmp.lt.s32.totalorder %s16, 1
          %s235 = scalar_select %p234, %s16, 1
          %s236 = smul.addr %s235, 4
          %s237 = smul.addr %s236, 8
          %s238 = scalar_lea.vmem %s0, %s237
        $region44: #{tpu_custom_call.1} parent=39 // pred_fallthru
          _
      $region40: #{tpu_custom_call.1} parent=5 // pred_fallthru
        _
      %p239 = scmp.le.s32.totalorder 1, %s16
      %p240 = scmp.lt.s32.totalorder %s16, 3
      %p241 = pnand %p239, %p240
      %p242 = pneg %p241
      // Predicated region
      $region45: #{tpu_custom_call.1} parent=5 // pred_check
        _
      $region46: #{tpu_custom_call.1} parent=5 // pred_check_branch
        %244 = sbr.rel (%p241) target = $region48
      $region47: #{tpu_custom_call.1} parent=5 // pred_region
        %s245 = ssub.s32 %s16, 1
        %p246 = scmp.lt.s32.totalorder %s21, 1
        %s247 = scalar_select %p246, %s21, 1
        %s248 = smul.addr %s247, 4
        %s249 = smul.addr %s248, 8
        %s250 = scalar_lea.vmem %s0, %s249
        %p251 = pneg %p42
        %p252 = pneg %p39
        %p253 = pneg %p63
        %p254 = pneg %p60
        %p255 = pneg %p84
        %p256 = pneg %p81
        %p257 = pneg %p105
        %p258 = pneg %p102
        %p259 = pneg %p126
        %p260 = pneg %p123
        %p261 = pneg %p147
        %p262 = pneg %p144
        %p263 = pneg %p168
        %p264 = pneg %p165
        %p265 = pneg %p194
        %p266 = pneg %p191
        %s267 = sand.u32 %s181, 1
        %s268 = scalar_lea.sflag [#allocation3], %s267
        %s269 = sand.u32 %s181, 1
        %s270 = smul.addr %s269, 32
        %s271 = scalar_lea.vmem [#allocation2], %s270
        %p272 = scmp.lt.s32.totalorder %s21, 1
        %s273 = scalar_select %p272, %s21, 1
        %s274 = smul.addr %s273, 4
        %s275 = smul.addr %s274, 8
        %s276 = scalar_lea.vmem %s0, %s275
        %v277 = vld [vmem:[%s276] sm:$0xff]
        %v278 = vld [vmem:[%s276 + $0x8] sm:$0xff]
        %v279 = vld [vmem:[%s276 + $0x10] sm:$0xff]
        %v280 = vld [vmem:[%s276 + $0x18] sm:$0xff]
        %v281 = vld [vmem:[%s5] sm:$0xff]
        %v282 = vld [vmem:[%s5 + $0x8] sm:$0xff]
        %v283 = vld [vmem:[%s6] sm:$0xff]
        %v284 = vld [vmem:[%s6 + $0x8] sm:$0xff]
        %v285 = vld [vmem:[%s1] sm:$0xff]
        %v286 = vld [vmem:[%s2] sm:$0xff]
        %288 = vset.pattern.permute.xlu0 0
        %289 = vperm.xlu0 %288, %v286
        %v290 = vpop.permute.xlu0 %289
        %vm292 = vcmask 130048
        %v294 = vsel %vm292, %v285, 0
        %296 = vmatprep.subr.mxu0 0.0
        %297 = vmatpush1.msra.mxu0 0.0
        %298 = vmatprep.subr.mxu0 0.0
        %299 = vmatpush1.msra.mxu0 0.0
        %300 = vmatprep.subr.mxu0 0.0
        %301 = vmatpush1.msra.mxu0 0.0
        %302 = vmatprep.subr.mxu0 0.0
        %303 = vmatpush1.msra.mxu0 0.0
        %304 = vmatprep.subr.mxu0 0.0
        %305 = vmatpush1.msra.mxu0 0.0
        %306 = vmatprep.subr.mxu0 0.0
        %307 = vmatpush1.msra.mxu0 0.0
        %308 = vmatprep.subr.mxu0 0.0
        %309 = vmatpush1.msra.mxu0 0.0
        %310 = vmatprep.subr.mxu0 0.0
        %311 = vmatpush1.msra.mxu0 0.0
        %312 = vmatprep.subr.mxu0 0.0
        %313 = vmatpush1.msra.mxu0 0.0
        %314 = vmatprep.subr.mxu0 0.0
        %315 = vmatpush1.msra.mxu0 0.0
        %316 = vmatprep.subr.mxu0 0.0
        %317 = vmatpush1.msra.mxu0 0.0
        %318 = vmatprep.subr.mxu0 0.0
        %319 = vmatpush1.msra.mxu0 0.0
        %320 = vmatprep.subr.mxu0 0.0
        %321 = vmatpush1.msra.mxu0 0.0
        %322 = vmatprep.subr.mxu0 0.0
        %323 = vmatpush1.msra.mxu0 0.0
        %324 = vmatprep.subr.mxu0 %v280
        %325 = vmatpush1.msra.mxu0 %v279
        %326 = vmatprep.subr.mxu0 %v278
        %327 = vmatpush1.msra.mxu0 %v277
        %328 = vmatprep.subr.mxu0 0.0
        %329 = vmatpush2.msra.mxu0 0.0
        %330 = vmatprep.subr.mxu0 0.0
        %331 = vmatpush2.msra.mxu0 0.0
        %332 = vmatprep.subr.mxu0 0.0
        %333 = vmatpush2.msra.mxu0 0.0
        %334 = vmatprep.subr.mxu0 0.0
        %335 = vmatpush2.msra.mxu0 0.0
        %336 = vmatprep.subr.mxu0 0.0
        %337 = vmatpush2.msra.mxu0 0.0
        %338 = vmatprep.subr.mxu0 0.0
        %339 = vmatpush2.msra.mxu0 0.0
        %340 = vmatprep.subr.mxu0 0.0
        %341 = vmatpush2.msra.mxu0 0.0
        %342 = vmatprep.subr.mxu0 0.0
        %343 = vmatpush2.msra.mxu0 0.0
        %344 = vmatprep.subr.mxu0 0.0
        %345 = vmatpush2.msra.mxu0 0.0
        %346 = vmatprep.subr.mxu0 0.0
        %347 = vmatpush2.msra.mxu0 0.0
        %348 = vmatprep.subr.mxu0 0.0
        %349 = vmatpush2.msra.mxu0 0.0
        %350 = vmatprep.subr.mxu0 0.0
        %351 = vmatpush2.msra.mxu0 0.0
        %352 = vmatprep.subr.mxu0 0.0
        %353 = vmatpush2.msra.mxu0 0.0
        %354 = vmatprep.subr.mxu0 0.0
        %355 = vmatpush2.msra.mxu0 0.0
        %356 = vmatprep.subr.mxu0 0.0
        %357 = vmatpush2.msra.mxu0 0.0
        %358 = vmatprep.subr.mxu0 0.0
        %359 = vmatpush2.msra.mxu0 0.0
        %360 = vmatprep.mubr.f32.mxu0 0.0
        %361 = vmatmul.mubr.f32.gmra.mxu0 %v294
        %v362 = vpop.f32.mrf.mxu0
        %v363 = vadd.f32 %v290, %v362
        %v364 = vpop.f32.mrf.mxu0
        %v365 = vadd.f32 %v290, %v364
        %366 = vdwg.mxu0
        %v367 = vsub.f32 0.0, %v363
        %v368 = vsub.f32 0.0, %v365
        %v369 = vmul.f32 %v367, 1.442695
        %v370 = vpow.pop %v369
        %v371 = vmul.f32 %v368, 1.442695
        %v372 = vpow.pop %v371
        %v373 = vadd.f32 %v370, 1.0
        %v374 = vadd.f32 %v372, 1.0
        %v375 = vrcp.pop %v373
        %v376 = vmul.f32 %v363, %v375
        %v377 = vrcp.pop %v374
        %v378 = vmul.f32 %v365, %v377
        %379 = vrot.lane.b32.xlu0 %v376, 2
        %v380 = vpop.permute.xlu0 %379
        %381 = vrot.lane.b32.xlu0 %v378, 2
        %v382 = vpop.permute.xlu0 %381
        %v383 = vlaneseq
        %v384 = vand.u32 %v383, 127
        %vm385 = vcmp.lt.s32.totalorder %v384, 2
        %v386 = vsel %vm385, %v380, %v382
        %v387 = vsel %vm385, %v382, %v380
        %vm388 = vcmp.ge.s32.totalorder %v281, 2
        %vm389 = vcmp.ge.s32.totalorder %v282, 2
        %vm390 = vcmp.lt.s32.totalorder %v281, 18
        %vm391 = vcmp.lt.s32.totalorder %v282, 18
        %vm392 = vmand %vm388, %vm390
        %vm393 = vmand %vm389, %vm391
        %v394 = vsel %vm392, %v387, -inf
        %v395 = vsel %vm393, %v386, -inf
        %v396 = vmax.f32 %v376, %v394
        %v397 = vmax.f32 %v378, %v395
        %398 = vrot.lane.b32.xlu0 %v376, 1
        %v399 = vpop.permute.xlu0 %398
        %400 = vrot.lane.b32.xlu0 %v378, 1
        %v401 = vpop.permute.xlu0 %400
        %vm402 = vcmp.lt.s32.totalorder %v384, 1
        %v403 = vsel %vm402, %v399, %v401
        %v404 = vsel %vm402, %v401, %v399
        %vm405 = vcmp.ge.s32.totalorder %v281, 1
        %vm406 = vcmp.ge.s32.totalorder %v282, 1
        %vm407 = vcmp.lt.s32.totalorder %v281, 17
        %vm408 = vcmp.lt.s32.totalorder %v282, 17
        %vm409 = vmand %vm405, %vm407
        %vm410 = vmand %vm406, %vm408
        %v411 = vsel %vm409, %v404, -inf
        %v412 = vsel %vm410, %v403, -inf
        %v413 = vmax.f32 %v396, %v411
        %v414 = vmax.f32 %v397, %v412
        %415 = vrot.lane.b32.xlu0 %v376, 127
        %v416 = vpop.permute.xlu0 %415
        %417 = vrot.lane.b32.xlu0 %v378, 127
        %v418 = vpop.permute.xlu0 %417
        %vm419 = vcmp.lt.s32.totalorder %v384, 127
        %v420 = vsel %vm419, %v416, %v418
        %v421 = vsel %vm419, %v418, %v416
        %vm422 = vcmp.ge.s32.totalorder %v281, 4294967295
        %vm423 = vcmp.ge.s32.totalorder %v282, 4294967295
        %vm424 = vcmp.lt.s32.totalorder %v281, 15
        %vm425 = vcmp.lt.s32.totalorder %v282, 15
        %vm426 = vmand %vm422, %vm424
        %vm427 = vmand %vm423, %vm425
        %v428 = vsel %vm426, %v420, -inf
        %v429 = vsel %vm427, %v421, -inf
        %v430 = vmax.f32 %v413, %v428
        %v431 = vmax.f32 %v414, %v429
        %432 = vrot.lane.b32.xlu0 %v376, 126
        %v433 = vpop.permute.xlu0 %432
        %434 = vrot.lane.b32.xlu0 %v378, 126
        %v435 = vpop.permute.xlu0 %434
        %vm436 = vcmp.lt.s32.totalorder %v384, 126
        %v437 = vsel %vm436, %v433, %v435
        %v438 = vsel %vm436, %v435, %v433
        %vm439 = vcmp.ge.s32.totalorder %v281, 4294967294
        %vm440 = vcmp.ge.s32.totalorder %v282, 4294967294
        %vm441 = vcmp.lt.s32.totalorder %v281, 14
        %vm442 = vcmp.lt.s32.totalorder %v282, 14
        %vm443 = vmand %vm439, %vm441
        %vm444 = vmand %vm440, %vm442
        %v445 = vsel %vm443, %v437, -inf
        %v446 = vsel %vm444, %v438, -inf
        %v447 = vmax.f32 %v430, %v445
        %v448 = vmax.f32 %v431, %v446
        %449 = vrot.lane.b32.xlu0 %v447, 32
        %v450 = vpop.permute.xlu0 %449
        %451 = vrot.lane.b32.xlu0 %v448, 32
        %v452 = vpop.permute.xlu0 %451
        %vm453 = vcmp.lt.s32.totalorder %v384, 32
        %v454 = vsel %vm453, %v450, %v452
        %v455 = vsel %vm453, %v452, %v450
        %vm456 = vcmp.ge.s32.totalorder %v283, 2
        %vm457 = vcmp.ge.s32.totalorder %v284, 2
        %vm458 = vcmp.lt.s32.totalorder %v283, 18
        %vm459 = vcmp.lt.s32.totalorder %v284, 18
        %vm460 = vmand %vm456, %vm458
        %vm461 = vmand %vm457, %vm459
        %v462 = vsel %vm460, %v455, -inf
        %v463 = vsel %vm461, %v454, -inf
        %v464 = vmax.f32 %v447, %v462
        %v465 = vmax.f32 %v448, %v463
        %466 = vrot.lane.b32.xlu0 %v447, 16
        %v467 = vpop.permute.xlu0 %466
        %468 = vrot.lane.b32.xlu0 %v448, 16
        %v469 = vpop.permute.xlu0 %468
        %vm470 = vcmp.lt.s32.totalorder %v384, 16
        %v471 = vsel %vm470, %v467, %v469
        %v472 = vsel %vm470, %v469, %v467
        %vm473 = vcmp.ge.s32.totalorder %v283, 1
        %vm474 = vcmp.ge.s32.totalorder %v284, 1
        %vm475 = vcmp.lt.s32.totalorder %v283, 17
        %vm476 = vcmp.lt.s32.totalorder %v284, 17
        %vm477 = vmand %vm473, %vm475
        %vm478 = vmand %vm474, %vm476
        %v479 = vsel %vm477, %v472, -inf
        %v480 = vsel %vm478, %v471, -inf
        %v481 = vmax.f32 %v464, %v479
        %v482 = vmax.f32 %v465, %v480
        %483 = vrot.lane.b32.xlu0 %v447, 112
        %v484 = vpop.permute.xlu0 %483
        %485 = vrot.lane.b32.xlu0 %v448, 112
        %v486 = vpop.permute.xlu0 %485
        %vm487 = vcmp.lt.s32.totalorder %v384, 112
        %v488 = vsel %vm487, %v484, %v486
        %v489 = vsel %vm487, %v486, %v484
        %vm490 = vcmp.ge.s32.totalorder %v283, 4294967295
        %vm491 = vcmp.ge.s32.totalorder %v284, 4294967295
        %vm492 = vcmp.lt.s32.totalorder %v283, 15
        %vm493 = vcmp.lt.s32.totalorder %v284, 15
        %vm494 = vmand %vm490, %vm492
        %vm495 = vmand %vm491, %vm493
        %v496 = vsel %vm494, %v488, -inf
        %v497 = vsel %vm495, %v489, -inf
        %v498 = vmax.f32 %v481, %v496
        %v499 = vmax.f32 %v482, %v497
        %500 = vrot.lane.b32.xlu0 %v447, 96
        %v501 = vpop.permute.xlu0 %500
        %502 = vrot.lane.b32.xlu0 %v448, 96
        %v503 = vpop.permute.xlu0 %502
        %vm504 = vcmp.lt.s32.totalorder %v384, 96
        %v505 = vsel %vm504, %v501, %v503
        %v506 = vsel %vm504, %v503, %v501
        %vm507 = vcmp.ge.s32.totalorder %v283, 4294967294
        %vm508 = vcmp.ge.s32.totalorder %v284, 4294967294
        %vm509 = vcmp.lt.s32.totalorder %v283, 14
        %vm510 = vcmp.lt.s32.totalorder %v284, 14
        %vm511 = vmand %vm507, %vm509
        %vm512 = vmand %vm508, %vm510
        %v513 = vsel %vm511, %v505, -inf
        %v514 = vsel %vm512, %v506, -inf
        %v515 = vmax.f32 %v498, %v513
        %v516 = vmax.f32 %v499, %v514
        %517 = vrot.lane.b32.xlu0 %v515, 2
        %v518 = vpop.permute.xlu0 %517
        %519 = vrot.lane.b32.xlu0 %v516, 2
        %v520 = vpop.permute.xlu0 %519
        %v521 = vsel %vm385, %v518, %v520
        %v522 = vsel %vm385, %v520, %v518
        %v523 = vsel %vm392, %v522, -inf
        %v524 = vsel %vm393, %v521, -inf
        %v525 = vmax.f32 %v515, %v523
        %v526 = vmax.f32 %v516, %v524
        %527 = vrot.lane.b32.xlu0 %v515, 1
        %v528 = vpop.permute.xlu0 %527
        %529 = vrot.lane.b32.xlu0 %v516, 1
        %v530 = vpop.permute.xlu0 %529
        %v531 = vsel %vm402, %v528, %v530
        %v532 = vsel %vm402, %v530, %v528
        %v533 = vsel %vm409, %v532, -inf
        %v534 = vsel %vm410, %v531, -inf
        %v535 = vmax.f32 %v525, %v533
        %v536 = vmax.f32 %v526, %v534
        %537 = vrot.lane.b32.xlu0 %v515, 127
        %v538 = vpop.permute.xlu0 %537
        %539 = vrot.lane.b32.xlu0 %v516, 127
        %v540 = vpop.permute.xlu0 %539
        %v541 = vsel %vm419, %v538, %v540
        %v542 = vsel %vm419, %v540, %v538
        %v543 = vsel %vm426, %v541, -inf
        %v544 = vsel %vm427, %v542, -inf
        %v545 = vmax.f32 %v535, %v543
        %v546 = vmax.f32 %v536, %v544
        %547 = vrot.lane.b32.xlu0 %v515, 126
        %v548 = vpop.permute.xlu0 %547
        %549 = vrot.lane.b32.xlu0 %v516, 126
        %v550 = vpop.permute.xlu0 %549
        %v551 = vsel %vm436, %v548, %v550
        %v552 = vsel %vm436, %v550, %v548
        %v553 = vsel %vm443, %v551, -inf
        %v554 = vsel %vm444, %v552, -inf
        %v555 = vmax.f32 %v545, %v553
        %v556 = vmax.f32 %v546, %v554
        %557 = vrot.lane.b32.xlu0 %v555, 32
        %v558 = vpop.permute.xlu0 %557
        %559 = vrot.lane.b32.xlu0 %v556, 32
        %v560 = vpop.permute.xlu0 %559
        %v561 = vsel %vm453, %v558, %v560
        %v562 = vsel %vm453, %v560, %v558
        %v563 = vsel %vm460, %v562, -inf
        %v564 = vsel %vm461, %v561, -inf
        %v565 = vmax.f32 %v555, %v563
        %v566 = vmax.f32 %v556, %v564
        %567 = vrot.lane.b32.xlu0 %v555, 16
        %v568 = vpop.permute.xlu0 %567
        %569 = vrot.lane.b32.xlu0 %v556, 16
        %v570 = vpop.permute.xlu0 %569
        %v571 = vsel %vm470, %v568, %v570
        %v572 = vsel %vm470, %v570, %v568
        %v573 = vsel %vm477, %v572, -inf
        %v574 = vsel %vm478, %v571, -inf
        %v575 = vmax.f32 %v565, %v573
        %v576 = vmax.f32 %v566, %v574
        %577 = vrot.lane.b32.xlu0 %v555, 112
        %v578 = vpop.permute.xlu0 %577
        %579 = vrot.lane.b32.xlu0 %v556, 112
        %v580 = vpop.permute.xlu0 %579
        %v581 = vsel %vm487, %v578, %v580
        %v582 = vsel %vm487, %v580, %v578
        %v583 = vsel %vm494, %v581, -inf
        %v584 = vsel %vm495, %v582, -inf
        %v585 = vmax.f32 %v575, %v583
        %v586 = vmax.f32 %v576, %v584
        %587 = vrot.lane.b32.xlu0 %v555, 96
        %v588 = vpop.permute.xlu0 %587
        %589 = vrot.lane.b32.xlu0 %v556, 96
        %v590 = vpop.permute.xlu0 %589
        %v591 = vsel %vm504, %v588, %v590
        %v592 = vsel %vm504, %v590, %v588
        %v593 = vsel %vm511, %v591, -inf
        %v594 = vsel %vm512, %v592, -inf
        %v595 = vmax.f32 %v585, %v593
        %v596 = vmax.f32 %v586, %v594
        %597 = vrot.lane.b32.xlu0 %v595, 2
        %v598 = vpop.permute.xlu0 %597
        %599 = vrot.lane.b32.xlu0 %v596, 2
        %v600 = vpop.permute.xlu0 %599
        %v601 = vsel %vm385, %v598, %v600
        %v602 = vsel %vm385, %v600, %v598
        %v603 = vsel %vm392, %v602, -inf
        %v604 = vsel %vm393, %v601, -inf
        %v605 = vmax.f32 %v595, %v603
        %v606 = vmax.f32 %v596, %v604
        %607 = vrot.lane.b32.xlu0 %v595, 1
        %v608 = vpop.permute.xlu0 %607
        %609 = vrot.lane.b32.xlu0 %v596, 1
        %v610 = vpop.permute.xlu0 %609
        %v611 = vsel %vm402, %v608, %v610
        %v612 = vsel %vm402, %v610, %v608
        %v613 = vsel %vm409, %v612, -inf
        %v614 = vsel %vm410, %v611, -inf
        %v615 = vmax.f32 %v605, %v613
        %v616 = vmax.f32 %v606, %v614
        %617 = vrot.lane.b32.xlu0 %v595, 127
        %v618 = vpop.permute.xlu0 %617
        %619 = vrot.lane.b32.xlu0 %v596, 127
        %v620 = vpop.permute.xlu0 %619
        %v621 = vsel %vm419, %v618, %v620
        %v622 = vsel %vm419, %v620, %v618
        %v623 = vsel %vm426, %v621, -inf
        %v624 = vsel %vm427, %v622, -inf
        %v625 = vmax.f32 %v615, %v623
        %v626 = vmax.f32 %v616, %v624
        %627 = vrot.lane.b32.xlu0 %v595, 126
        %v628 = vpop.permute.xlu0 %627
        %629 = vrot.lane.b32.xlu0 %v596, 126
        %v630 = vpop.permute.xlu0 %629
        %v631 = vsel %vm436, %v628, %v630
        %v632 = vsel %vm436, %v630, %v628
        %v633 = vsel %vm443, %v631, -inf
        %v634 = vsel %vm444, %v632, -inf
        %v635 = vmax.f32 %v625, %v633
        %v636 = vmax.f32 %v626, %v634
        %637 = vrot.lane.b32.xlu0 %v635, 32
        %v638 = vpop.permute.xlu0 %637
        %639 = vrot.lane.b32.xlu0 %v636, 32
        %v640 = vpop.permute.xlu0 %639
        %v641 = vsel %vm453, %v638, %v640
        %v642 = vsel %vm453, %v640, %v638
        %v643 = vsel %vm460, %v642, -inf
        %v644 = vsel %vm461, %v641, -inf
        %v645 = vmax.f32 %v635, %v643
        %v646 = vmax.f32 %v636, %v644
        %647 = vrot.lane.b32.xlu0 %v635, 16
        %v648 = vpop.permute.xlu0 %647
        %649 = vrot.lane.b32.xlu0 %v636, 16
        %v650 = vpop.permute.xlu0 %649
        %v651 = vsel %vm470, %v648, %v650
        %v652 = vsel %vm470, %v650, %v648
        %v653 = vsel %vm477, %v652, -inf
        %v654 = vsel %vm478, %v651, -inf
        %v655 = vmax.f32 %v645, %v653
        %v656 = vmax.f32 %v646, %v654
        %657 = vrot.lane.b32.xlu0 %v635, 112
        %v658 = vpop.permute.xlu0 %657
        %659 = vrot.lane.b32.xlu0 %v636, 112
        %v660 = vpop.permute.xlu0 %659
        %v661 = vsel %vm487, %v658, %v660
        %v662 = vsel %vm487, %v660, %v658
        %v663 = vsel %vm494, %v661, -inf
        %v664 = vsel %vm495, %v662, -inf
        %v665 = vmax.f32 %v655, %v663
        %v666 = vmax.f32 %v656, %v664
        %667 = vrot.lane.b32.xlu0 %v635, 96
        %v668 = vpop.permute.xlu0 %667
        %669 = vrot.lane.b32.xlu0 %v636, 96
        %v670 = vpop.permute.xlu0 %669
        %v671 = vsel %vm504, %v668, %v670
        %v672 = vsel %vm504, %v670, %v668
        %v673 = vsel %vm511, %v671, -inf
        %v674 = vsel %vm512, %v672, -inf
        %v675 = vmax.f32 %v665, %v673
        %v676 = vmax.f32 %v666, %v674
        %v677 = vld [vmem:[%s4] sm:$0xff]
        %v678 = vld [vmem:[%s4 + $0x8] sm:$0xff]
        %v679 = vld [vmem:[%s3] sm:$0xff]
        %v680 = vld [vmem:[%s3 + $0x8] sm:$0xff]
        %vm681 = vcmask 64512
        %v683 = vsel %vm681, %v679, 0
        %v686 = vsel %vm681, %v680, 0
        %688 = vmatprep.subr.mxu0 0.0
        %689 = vmatpush1.msra.mxu0 0.0
        %690 = vmatprep.subr.mxu0 0.0
        %691 = vmatpush1.msra.mxu0 0.0
        %692 = vmatprep.subr.mxu0 0.0
        %693 = vmatpush1.msra.mxu0 0.0
        %694 = vmatprep.subr.mxu0 0.0
        %695 = vmatpush1.msra.mxu0 0.0
        %696 = vmatprep.subr.mxu0 0.0
        %697 = vmatpush1.msra.mxu0 0.0
        %698 = vmatprep.subr.mxu0 0.0
        %699 = vmatpush1.msra.mxu0 0.0
        %700 = vmatprep.subr.mxu0 0.0
        %701 = vmatpush1.msra.mxu0 0.0
        %702 = vmatprep.subr.mxu0 0.0
        %703 = vmatpush1.msra.mxu0 0.0
        %704 = vmatprep.subr.mxu0 0.0
        %705 = vmatpush1.msra.mxu0 0.0
        %706 = vmatprep.subr.mxu0 0.0
        %707 = vmatpush1.msra.mxu0 0.0
        %708 = vmatprep.subr.mxu0 0.0
        %709 = vmatpush1.msra.mxu0 0.0
        %710 = vmatprep.subr.mxu0 0.0
        %711 = vmatpush1.msra.mxu0 0.0
        %712 = vmatprep.subr.mxu0 0.0
        %713 = vmatpush1.msra.mxu0 0.0
        %714 = vmatprep.subr.mxu0 0.0
        %715 = vmatpush1.msra.mxu0 0.0
        %716 = vmatprep.subr.mxu0 0.0
        %717 = vmatpush1.msra.mxu0 0.0
        %718 = vmatprep.subr.mxu0 %v378
        %719 = vmatpush1.msra.mxu0 %v376
        %720 = vmatprep.subr.mxu0 0.0
        %721 = vmatpush2.msra.mxu0 0.0
        %722 = vmatprep.subr.mxu0 0.0
        %723 = vmatpush2.msra.mxu0 0.0
        %724 = vmatprep.subr.mxu0 0.0
        %725 = vmatpush2.msra.mxu0 0.0
        %726 = vmatprep.subr.mxu0 0.0
        %727 = vmatpush2.msra.mxu0 0.0
        %728 = vmatprep.subr.mxu0 0.0
        %729 = vmatpush2.msra.mxu0 0.0
        %730 = vmatprep.subr.mxu0 0.0
        %731 = vmatpush2.msra.mxu0 0.0
        %732 = vmatprep.subr.mxu0 0.0
        %733 = vmatpush2.msra.mxu0 0.0
        %734 = vmatprep.subr.mxu0 0.0
        %735 = vmatpush2.msra.mxu0 0.0
        %736 = vmatprep.subr.mxu0 0.0
        %737 = vmatpush2.msra.mxu0 0.0
        %738 = vmatprep.subr.mxu0 0.0
        %739 = vmatpush2.msra.mxu0 0.0
        %740 = vmatprep.subr.mxu0 0.0
        %741 = vmatpush2.msra.mxu0 0.0
        %742 = vmatprep.subr.mxu0 0.0
        %743 = vmatpush2.msra.mxu0 0.0
        %744 = vmatprep.subr.mxu0 0.0
        %745 = vmatpush2.msra.mxu0 0.0
        %746 = vmatprep.subr.mxu0 0.0
        %747 = vmatpush2.msra.mxu0 0.0
        %748 = vmatprep.subr.mxu0 0.0
        %749 = vmatpush2.msra.mxu0 0.0
        %750 = vmatprep.subr.mxu0 0.0
        %751 = vmatpush2.msra.mxu0 0.0
        %752 = vmatprep.mubr.f32.mxu0 0.0
        %753 = vmatmul.mubr.f32.gmra.mxu0 %v683
        %v754 = vpop.f32.mrf.mxu0
        %v755 = vadd.f32 0.0, %v754
        %v756 = vpop.f32.mrf.mxu0
        %v757 = vadd.f32 0.0, %v756
        %758 = vmatprep.mubr.f32.mxu0 0.0
        %759 = vmatmul.mubr.f32.gmra.mxu0 %v686
        %v760 = vpop.f32.mrf.mxu0
        %v761 = vadd.f32 0.0, %v760
        %v762 = vpop.f32.mrf.mxu0
        %v763 = vadd.f32 0.0, %v762
        %764 = vdwg.mxu0
        %766 = vset.pattern.permute.xlu0 0
        %767 = vperm.xlu0 %766, %v677
        %v768 = vpop.permute.xlu0 %767
        %771 = vset.pattern.permute.xlu0 0
        %772 = vperm.xlu0 %771, %v678
        %v773 = vpop.permute.xlu0 %772
        %v775 = vadd.f32 %v768, %v755
        %v776 = vadd.f32 %v768, %v757
        %v777 = vadd.f32 %v773, %v761
        %v778 = vadd.f32 %v773, %v763
        %s779 = scalar_lea.vmem %s3, 16
        %v780 = vld [vmem:[%s779] sm:$0xff]
        %v781 = vld [vmem:[%s779 + $0x8] sm:$0xff]
        %v783 = vsel %vm681, %v780, 0
        %v786 = vsel %vm681, %v781, 0
        %788 = vmatprep.subr.mxu0 0.0
        %789 = vmatpush1.msra.mxu0 0.0
        %790 = vmatprep.subr.mxu0 0.0
        %791 = vmatpush1.msra.mxu0 0.0
        %792 = vmatprep.subr.mxu0 0.0
        %793 = vmatpush1.msra.mxu0 0.0
        %794 = vmatprep.subr.mxu0 0.0
        %795 = vmatpush1.msra.mxu0 0.0
        %796 = vmatprep.subr.mxu0 0.0
        %797 = vmatpush1.msra.mxu0 0.0
        %798 = vmatprep.subr.mxu0 0.0
        %799 = vmatpush1.msra.mxu0 0.0
        %800 = vmatprep.subr.mxu0 0.0
        %801 = vmatpush1.msra.mxu0 0.0
        %802 = vmatprep.subr.mxu0 0.0
        %803 = vmatpush1.msra.mxu0 0.0
        %804 = vmatprep.subr.mxu0 0.0
        %805 = vmatpush1.msra.mxu0 0.0
        %806 = vmatprep.subr.mxu0 0.0
        %807 = vmatpush1.msra.mxu0 0.0
        %808 = vmatprep.subr.mxu0 0.0
        %809 = vmatpush1.msra.mxu0 0.0
        %810 = vmatprep.subr.mxu0 0.0
        %811 = vmatpush1.msra.mxu0 0.0
        %812 = vmatprep.subr.mxu0 0.0
        %813 = vmatpush1.msra.mxu0 0.0
        %814 = vmatprep.subr.mxu0 0.0
        %815 = vmatpush1.msra.mxu0 0.0
        %816 = vmatprep.subr.mxu0 0.0
        %817 = vmatpush1.msra.mxu0 0.0
        %818 = vmatprep.subr.mxu0 %v516
        %819 = vmatpush1.msra.mxu0 %v515
        %820 = vmatprep.subr.mxu0 0.0
        %821 = vmatpush2.msra.mxu0 0.0
        %822 = vmatprep.subr.mxu0 0.0
        %823 = vmatpush2.msra.mxu0 0.0
        %824 = vmatprep.subr.mxu0 0.0
        %825 = vmatpush2.msra.mxu0 0.0
        %826 = vmatprep.subr.mxu0 0.0
        %827 = vmatpush2.msra.mxu0 0.0
        %828 = vmatprep.subr.mxu0 0.0
        %829 = vmatpush2.msra.mxu0 0.0
        %830 = vmatprep.subr.mxu0 0.0
        %831 = vmatpush2.msra.mxu0 0.0
        %832 = vmatprep.subr.mxu0 0.0
        %833 = vmatpush2.msra.mxu0 0.0
        %834 = vmatprep.subr.mxu0 0.0
        %835 = vmatpush2.msra.mxu0 0.0
        %836 = vmatprep.subr.mxu0 0.0
        %837 = vmatpush2.msra.mxu0 0.0
        %838 = vmatprep.subr.mxu0 0.0
        %839 = vmatpush2.msra.mxu0 0.0
        %840 = vmatprep.subr.mxu0 0.0
        %841 = vmatpush2.msra.mxu0 0.0
        %842 = vmatprep.subr.mxu0 0.0
        %843 = vmatpush2.msra.mxu0 0.0
        %844 = vmatprep.subr.mxu0 0.0
        %845 = vmatpush2.msra.mxu0 0.0
        %846 = vmatprep.subr.mxu0 0.0
        %847 = vmatpush2.msra.mxu0 0.0
        %848 = vmatprep.subr.mxu0 0.0
        %849 = vmatpush2.msra.mxu0 0.0
        %850 = vmatprep.subr.mxu0 0.0
        %851 = vmatpush2.msra.mxu0 0.0
        %852 = vmatprep.mubr.f32.mxu0 0.0
        %853 = vmatmul.mubr.f32.gmra.mxu0 %v783
        %v854 = vpop.f32.mrf.mxu0
        %v855 = vadd.f32 0.0, %v854
        %v856 = vpop.f32.mrf.mxu0
        %v857 = vadd.f32 0.0, %v856
        %858 = vmatprep.mubr.f32.mxu0 0.0
        %859 = vmatmul.mubr.f32.gmra.mxu0 %v786
        %v860 = vpop.f32.mrf.mxu0
        %v861 = vadd.f32 0.0, %v860
        %v862 = vpop.f32.mrf.mxu0
        %v863 = vadd.f32 0.0, %v862
        %864 = vdwg.mxu0
        %v865 = vadd.f32 %v775, %v855
        %v866 = vadd.f32 %v776, %v857
        %v867 = vadd.f32 %v777, %v861
        %v868 = vadd.f32 %v778, %v863
        %s869 = scalar_lea.vmem %s3, 32
        %v870 = vld [vmem:[%s869] sm:$0xff]
        %v871 = vld [vmem:[%s869 + $0x8] sm:$0xff]
        %v873 = vsel %vm681, %v870, 0
        %v876 = vsel %vm681, %v871, 0
        %878 = vmatprep.subr.mxu0 0.0
        %879 = vmatpush1.msra.mxu0 0.0
        %880 = vmatprep.subr.mxu0 0.0
        %881 = vmatpush1.msra.mxu0 0.0
        %882 = vmatprep.subr.mxu0 0.0
        %883 = vmatpush1.msra.mxu0 0.0
        %884 = vmatprep.subr.mxu0 0.0
        %885 = vmatpush1.msra.mxu0 0.0
        %886 = vmatprep.subr.mxu0 0.0
        %887 = vmatpush1.msra.mxu0 0.0
        %888 = vmatprep.subr.mxu0 0.0
        %889 = vmatpush1.msra.mxu0 0.0
        %890 = vmatprep.subr.mxu0 0.0
        %891 = vmatpush1.msra.mxu0 0.0
        %892 = vmatprep.subr.mxu0 0.0
        %893 = vmatpush1.msra.mxu0 0.0
        %894 = vmatprep.subr.mxu0 0.0
        %895 = vmatpush1.msra.mxu0 0.0
        %896 = vmatprep.subr.mxu0 0.0
        %897 = vmatpush1.msra.mxu0 0.0
        %898 = vmatprep.subr.mxu0 0.0
        %899 = vmatpush1.msra.mxu0 0.0
        %900 = vmatprep.subr.mxu0 0.0
        %901 = vmatpush1.msra.mxu0 0.0
        %902 = vmatprep.subr.mxu0 0.0
        %903 = vmatpush1.msra.mxu0 0.0
        %904 = vmatprep.subr.mxu0 0.0
        %905 = vmatpush1.msra.mxu0 0.0
        %906 = vmatprep.subr.mxu0 0.0
        %907 = vmatpush1.msra.mxu0 0.0
        %908 = vmatprep.subr.mxu0 %v596
        %909 = vmatpush1.msra.mxu0 %v595
        %910 = vmatprep.subr.mxu0 0.0
        %911 = vmatpush2.msra.mxu0 0.0
        %912 = vmatprep.subr.mxu0 0.0
        %913 = vmatpush2.msra.mxu0 0.0
        %914 = vmatprep.subr.mxu0 0.0
        %915 = vmatpush2.msra.mxu0 0.0
        %916 = vmatprep.subr.mxu0 0.0
        %917 = vmatpush2.msra.mxu0 0.0
        %918 = vmatprep.subr.mxu0 0.0
        %919 = vmatpush2.msra.mxu0 0.0
        %920 = vmatprep.subr.mxu0 0.0
        %921 = vmatpush2.msra.mxu0 0.0
        %922 = vmatprep.subr.mxu0 0.0
        %923 = vmatpush2.msra.mxu0 0.0
        %924 = vmatprep.subr.mxu0 0.0
        %925 = vmatpush2.msra.mxu0 0.0
        %926 = vmatprep.subr.mxu0 0.0
        %927 = vmatpush2.msra.mxu0 0.0
        %928 = vmatprep.subr.mxu0 0.0
        %929 = vmatpush2.msra.mxu0 0.0
        %930 = vmatprep.subr.mxu0 0.0
        %931 = vmatpush2.msra.mxu0 0.0
        %932 = vmatprep.subr.mxu0 0.0
        %933 = vmatpush2.msra.mxu0 0.0
        %934 = vmatprep.subr.mxu0 0.0
        %935 = vmatpush2.msra.mxu0 0.0
        %936 = vmatprep.subr.mxu0 0.0
        %937 = vmatpush2.msra.mxu0 0.0
        %938 = vmatprep.subr.mxu0 0.0
        %939 = vmatpush2.msra.mxu0 0.0
        %940 = vmatprep.subr.mxu0 0.0
        %941 = vmatpush2.msra.mxu0 0.0
        %942 = vmatprep.mubr.f32.mxu0 0.0
        %943 = vmatmul.mubr.f32.gmra.mxu0 %v873
        %v944 = vpop.f32.mrf.mxu0
        %v945 = vadd.f32 0.0, %v944
        %v946 = vpop.f32.mrf.mxu0
        %v947 = vadd.f32 0.0, %v946
        %948 = vmatprep.mubr.f32.mxu0 0.0
        %949 = vmatmul.mubr.f32.gmra.mxu0 %v876
        %v950 = vpop.f32.mrf.mxu0
        %v951 = vadd.f32 0.0, %v950
        %v952 = vpop.f32.mrf.mxu0
        %v953 = vadd.f32 0.0, %v952
        %954 = vdwg.mxu0
        %v955 = vadd.f32 %v865, %v945
        %v956 = vadd.f32 %v866, %v947
        %v957 = vadd.f32 %v867, %v951
        %v958 = vadd.f32 %v868, %v953
        %s959 = scalar_lea.vmem %s3, 48
        %v960 = vld [vmem:[%s959] sm:$0xff]
        %v961 = vld [vmem:[%s959 + $0x8] sm:$0xff]
        %v963 = vsel %vm681, %v960, 0
        %v966 = vsel %vm681, %v961, 0
        %968 = vmatprep.subr.mxu0 0.0
        %969 = vmatpush1.msra.mxu0 0.0
        %970 = vmatprep.subr.mxu0 0.0
        %971 = vmatpush1.msra.mxu0 0.0
        %972 = vmatprep.subr.mxu0 0.0
        %973 = vmatpush1.msra.mxu0 0.0
        %974 = vmatprep.subr.mxu0 0.0
        %975 = vmatpush1.msra.mxu0 0.0
        %976 = vmatprep.subr.mxu0 0.0
        %977 = vmatpush1.msra.mxu0 0.0
        %978 = vmatprep.subr.mxu0 0.0
        %979 = vmatpush1.msra.mxu0 0.0
        %980 = vmatprep.subr.mxu0 0.0
        %981 = vmatpush1.msra.mxu0 0.0
        %982 = vmatprep.subr.mxu0 0.0
        %983 = vmatpush1.msra.mxu0 0.0
        %984 = vmatprep.subr.mxu0 0.0
        %985 = vmatpush1.msra.mxu0 0.0
        %986 = vmatprep.subr.mxu0 0.0
        %987 = vmatpush1.msra.mxu0 0.0
        %988 = vmatprep.subr.mxu0 0.0
        %989 = vmatpush1.msra.mxu0 0.0
        %990 = vmatprep.subr.mxu0 0.0
        %991 = vmatpush1.msra.mxu0 0.0
        %992 = vmatprep.subr.mxu0 0.0
        %993 = vmatpush1.msra.mxu0 0.0
        %994 = vmatprep.subr.mxu0 0.0
        %995 = vmatpush1.msra.mxu0 0.0
        %996 = vmatprep.subr.mxu0 0.0
        %997 = vmatpush1.msra.mxu0 0.0
        %998 = vmatprep.subr.mxu0 %v676
        %999 = vmatpush1.msra.mxu0 %v675
        %1000 = vmatprep.subr.mxu0 0.0
        %1001 = vmatpush2.msra.mxu0 0.0
        %1002 = vmatprep.subr.mxu0 0.0
        %1003 = vmatpush2.msra.mxu0 0.0
        %1004 = vmatprep.subr.mxu0 0.0
        %1005 = vmatpush2.msra.mxu0 0.0
        %1006 = vmatprep.subr.mxu0 0.0
        %1007 = vmatpush2.msra.mxu0 0.0
        %1008 = vmatprep.subr.mxu0 0.0
        %1009 = vmatpush2.msra.mxu0 0.0
        %1010 = vmatprep.subr.mxu0 0.0
        %1011 = vmatpush2.msra.mxu0 0.0
        %1012 = vmatprep.subr.mxu0 0.0
        %1013 = vmatpush2.msra.mxu0 0.0
        %1014 = vmatprep.subr.mxu0 0.0
        %1015 = vmatpush2.msra.mxu0 0.0
        %1016 = vmatprep.subr.mxu0 0.0
        %1017 = vmatpush2.msra.mxu0 0.0
        %1018 = vmatprep.subr.mxu0 0.0
        %1019 = vmatpush2.msra.mxu0 0.0
        %1020 = vmatprep.subr.mxu0 0.0
        %1021 = vmatpush2.msra.mxu0 0.0
        %1022 = vmatprep.subr.mxu0 0.0
        %1023 = vmatpush2.msra.mxu0 0.0
        %1024 = vmatprep.subr.mxu0 0.0
        %1025 = vmatpush2.msra.mxu0 0.0
        %1026 = vmatprep.subr.mxu0 0.0
        %1027 = vmatpush2.msra.mxu0 0.0
        %1028 = vmatprep.subr.mxu0 0.0
        %1029 = vmatpush2.msra.mxu0 0.0
        %1030 = vmatprep.subr.mxu0 0.0
        %1031 = vmatpush2.msra.mxu0 0.0
        %1032 = vmatprep.mubr.f32.mxu0 0.0
        %1033 = vmatmul.mubr.f32.gmra.mxu0 %v963
        %v1034 = vpop.f32.mrf.mxu0
        %v1035 = vadd.f32 0.0, %v1034
        %v1036 = vpop.f32.mrf.mxu0
        %v1037 = vadd.f32 0.0, %v1036
        %1038 = vmatprep.mubr.f32.mxu0 0.0
        %1039 = vmatmul.mubr.f32.gmra.mxu0 %v966
        %v1040 = vpop.f32.mrf.mxu0
        %v1041 = vadd.f32 0.0, %v1040
        %v1042 = vpop.f32.mrf.mxu0
        %v1043 = vadd.f32 0.0, %v1042
        %1044 = vdwg.mxu0
        %v1045 = vadd.f32 %v955, %v1035
        %v1046 = vadd.f32 %v956, %v1037
        %v1047 = vadd.f32 %v957, %v1041
        %v1048 = vadd.f32 %v958, %v1043
        %v1049 = vsub.f32 0.0, %v1045
        %v1050 = vsub.f32 0.0, %v1046
        %v1051 = vsub.f32 0.0, %v1047
        %v1052 = vsub.f32 0.0, %v1048
        %v1053 = vmul.f32 %v1049, 1.442695
        %v1054 = vpow.pop %v1053
        %v1055 = vmul.f32 %v1050, 1.442695
        %v1056 = vpow.pop %v1055
        %v1057 = vmul.f32 %v1051, 1.442695
        %v1058 = vpow.pop %v1057
        %v1059 = vmul.f32 %v1052, 1.442695
        %v1060 = vpow.pop %v1059
        %v1061 = vadd.f32 %v1054, 1.0
        %v1062 = vadd.f32 %v1056, 1.0
        %v1063 = vadd.f32 %v1058, 1.0
        %v1064 = vadd.f32 %v1060, 1.0
        %v1065 = vrcp.pop %v1061
        %v1066 = vmul.f32 %v1045, %v1065
        %v1067 = vrcp.pop %v1062
        %v1068 = vmul.f32 %v1046, %v1067
        %v1069 = vrcp.pop %v1063
        %v1070 = vmul.f32 %v1047, %v1069
        %v1071 = vrcp.pop %v1064
        %v1072 = vmul.f32 %v1048, %v1071
        %1073 = vst [vmem:[%s271] sm:$0xff] %v1066
        %1074 = vst [vmem:[%s271 + $0x8] sm:$0xff] %v1068
        %1075 = vst [vmem:[%s271 + $0x10] sm:$0xff] %v1070
        %1076 = vst [vmem:[%s271 + $0x18] sm:$0xff] %v1072
        %s1077 = sand.u32 %s181, 1
        %s1078 = scalar_lea.sflag [#allocation3], %s1077
        %s1079 = sand.u32 %s181, 1
        %s1080 = smul.addr %s1079, 32
        %s1081 = scalar_lea.vmem [#allocation2], %s1080
        // Predicated region
        $region49: #{tpu_custom_call.1} parent=47 // pred_check
          %p1082 = pneg %p191
        $region50: #{tpu_custom_call.1} parent=47 // pred_check_branch
          %1084 = sbr.rel (%p1082) target = $region52
        $region51: #{tpu_custom_call.1} parent=47 // pred_region
          %s1086 = ssub.s32 512, 512
          %1087 = vsyncadd %s1078, %s1086
          %s1088 = smul.addr %s21, 4
          %s1089 = smul.addr %s1088, 128
          %s1090 = scalar_lea.hbm %s7, %s1089
          %s1091 = sshll.u32 %s1081, 4
          %s1092 = int_to_ptr.vmem [resolvable:$true] %s1091
          %1097 = dma.vmem_to_hbm [thread:$0]  %s1092, 512, %s1090, %s1078, 256, 256, 16
        $region52: #{tpu_custom_call.1} parent=47 // pred_fallthru
          _
      $region48: #{tpu_custom_call.1} parent=5 // pred_fallthru
        _
      %p1098 = scmp.le.s32.totalorder 2, %s16
      // Predicated region
      $region53: #{tpu_custom_call.1} parent=5 // pred_check
        %p1099 = pneg %p1098
      $region54: #{tpu_custom_call.1} parent=5 // pred_check_branch
        %1101 = sbr.rel (%p1099) target = $region56
      $region55: #{tpu_custom_call.1} parent=5 // pred_region
        %s1102 = ssub.s32 %s16, 2
        // Predicated region
        $region57: #{tpu_custom_call.1} parent=55 // pred_check
          %p1103 = pneg %p197
        $region58: #{tpu_custom_call.1} parent=55 // pred_check_branch
          %1105 = sbr.rel (%p1103) target = $region60
        $region59: #{tpu_custom_call.1} parent=55 // pred_region
          %s1106 = sand.u32 %s182, 1
          %s1107 = scalar_lea.sflag [#allocation3], %s1106
          %s1108 = sand.u32 %s182, 1
          %s1109 = smul.addr %s1108, 32
          %s1110 = scalar_lea.vmem [#allocation2], %s1109
          %1111 = dma.done %s1107, 512
        $region60: #{tpu_custom_call.1} parent=55 // pred_fallthru
          _
      $region56: #{tpu_custom_call.1} parent=5 // pred_fallthru
        _
    $region6: #{tpu_custom_call.1} parent=1 // loop_footer
      %s20 = sadd.s32 1, %s16
    $region7: #{tpu_custom_call.1} parent=1 // loop_footer_branch
      %15 = sbr.rel target = $region3
    $region8: #{tpu_custom_call.1} parent=1 // loop_exit
      _
    %1112 = vsyncpa [#allocation3], 1
    %s1113 = scalar_lea.sflag [#allocation3], 1
    %1114 = vsyncpa %s1113, 1

</llo_original>
